<compile_context>
chip_gen: v7x
topology: tpu7x:2x2x1
jax: 0.10.0
libtpu: 0.0.40
codegen_flags: <defaults>
</compile_context>

<pallas_src>
import functools

import jax
import jax.numpy as jnp
from jax.experimental import pallas as pl
from jax.experimental.pallas import tpu as pltpu


def _resnet_block_kernel(xpad_ref, w_ref, mask_ref, o_ref, *, Wp, HW):
    """Per-sample fused conv3x3 + instance-norm + ReLU + residual.

    xpad_ref: (1, C, S)      reflection-padded input, S = Hp*Wp flattened
    w_ref:    (3, 3, C, C)   conv weights as (kh, kw, Cout, Cin)
    mask_ref: (1, S)         1.0 at interior (un-padded) positions, else 0.0
    o_ref:    (1, C, S)      output on the padded grid (wrapper slices interior)
    """
    _, C, S = xpad_ref.shape
    xf = xpad_ref[0]                                  # (C, S), lanes = pixels

    # 3x3 conv as 9 lane-rolls + (Cout,Cin)@(Cin,S) MXU matmuls, f32 accumulate.
    acc = jnp.zeros((C, S), dtype=jnp.float32)
    for kh in range(3):
        for kw in range(3):
            d = (kh - 1) * Wp + (kw - 1)              # flat-index tap offset
            if d == 0:
                shifted = xf
            else:
                # shifted[p] == xf[p + d]  (wrap only touches border positions,
                # which are masked out of the stats and discarded on output).
                shifted = pltpu.roll(xf, shift=(-d) % S, axis=1)
            acc = acc + jnp.dot(
                w_ref[kh, kw], shifted, preferred_element_type=jnp.float32
            )
    # NOTE: conv bias intentionally omitted -- cancelled by InstanceNorm.

    # InstanceNorm2d (affine=False, eps=1e-5) over interior positions only,
    # one-pass sufficient statistics, lane-axis reductions.
    mask = mask_ref[...]                              # (1, S)
    masked = acc * mask
    inv_n = 1.0 / HW
    mean = jnp.sum(masked, axis=-1, keepdims=True) * inv_n          # (C, 1)
    ex2 = jnp.sum(masked * acc, axis=-1, keepdims=True) * inv_n     # (C, 1)
    var = ex2 - mean * mean
    normed = (acc - mean) * jax.lax.rsqrt(var + 1e-5)

    # ReLU + residual (interior of xf is exactly the original x).
    y = jnp.maximum(normed, 0.0)
    o_ref[0] = (xf + y).astype(o_ref.dtype)


def resnet_block_forward(x_nchw, weight_oihw, bias=None):
    """ResnetBlock forward.

    x_nchw:      (N, C, H, W) float32
    weight_oihw: (C, C, 3, 3) float32 (PyTorch Conv2d layout)
    bias:        (C,) float32 -- unused: cancelled exactly by the affine-free
                 InstanceNorm that follows the conv.
    returns:     (N, C, H, W) float32
    """
    del bias
    N, C, H, W = x_nchw.shape
    Hp, Wp = H + 2, W + 2
    S = Hp * Wp

    # Wrapper-side layout plumbing (no transposes needed: NCHW is already
    # channels-first).  Reshape NCHpWp -> (N, C, S) is metadata-only.
    xpad = jnp.pad(x_nchw, ((0, 0), (0, 0), (1, 1), (1, 1)), mode="reflect")
    xflat = xpad.reshape(N, C, S)

    # (O, I, kh, kw) -> (kh, kw, O, I)
    w = jnp.transpose(weight_oihw, (2, 3, 0, 1))

    # Interior mask over flattened padded positions.
    pos = jnp.arange(S)
    row = pos // Wp
    col = pos - row * Wp
    interior = (row >= 1) & (row <= H) & (col >= 1) & (col <= W)
    mask = interior.astype(jnp.float32).reshape(1, S)

    kernel = functools.partial(_resnet_block_kernel, Wp=Wp, HW=H * W)

    out_flat = pl.pallas_call(
        kernel,
        out_shape=jax.ShapeDtypeStruct((N, C, S), x_nchw.dtype),
        grid_spec=pltpu.PrefetchScalarGridSpec(
            num_scalar_prefetch=0,
            grid=(N,),
            in_specs=[
                pl.BlockSpec((1, C, S), lambda n: (n, 0, 0)),
                pl.BlockSpec((3, 3, C, C), lambda n: (0, 0, 0, 0)),
                pl.BlockSpec((1, S), lambda n: (0, 0)),
            ],
            out_specs=pl.BlockSpec((1, C, S), lambda n: (n, 0, 0)),
        ),
        compiler_params=pltpu.CompilerParams(
            dimension_semantics=("parallel",),
        ),
    )(xflat, w, mask)

    # Slice the valid interior back out (cheap XLA slice).
    out_pad = out_flat.reshape(N, C, Hp, Wp)
    return out_pad[:, :, 1:H + 1, 1:W + 1]


def _reference_forward(x_nchw, weight_oihw, bias):
    """Pure-JAX reference (lax.conv) for correctness checking."""
    x = jnp.pad(x_nchw, ((0, 0), (0, 0), (1, 1), (1, 1)), mode="reflect")
    conv = jax.lax.conv_general_dilated(
        x, weight_oihw, window_strides=(1, 1), padding="VALID",
        dimension_numbers=("NCHW", "OIHW", "NCHW"),
    ) + bias.reshape(1, -1, 1, 1)
    mean = jnp.mean(conv, axis=(2, 3), keepdims=True)
    var = jnp.mean((conv - mean) ** 2, axis=(2, 3), keepdims=True)
    normed = (conv - mean) * jax.lax.rsqrt(var + 1e-5)
    return x_nchw + jnp.maximum(normed, 0.0)


if __name__ == "__main__":
    N, C, H, W = 2, 4, 16, 16
    key = jax.random.PRNGKey(0)
    kx, kw, kb = jax.random.split(key, 3)

    x = jax.random.normal(kx, (N, C, H, W), dtype=jnp.float32)
    # Deterministic synthetic Conv2d(dim, dim, 3) params (PyTorch OIHW layout).
    weight = jax.random.normal(kw, (C, C, 3, 3), dtype=jnp.float32) * 0.1
    bias = jax.random.normal(kb, (C,), dtype=jnp.float32) * 0.1

    out = jax.block_until_ready(resnet_block_forward(x, weight, bias))
    ref = jax.block_until_ready(_reference_forward(x, weight, bias))

    assert out.shape == (N, C, H, W)
    assert jnp.allclose(out, ref, atol=1e-4, rtol=1e-4), "mismatch vs reference"

    print("KERNEL_OK")
</pallas_src>

<mosaic_0001>
module attributes {stable_mosaic.version = 11 : i64} {
  func.func @_resnet_block_kernel(%arg0: i32, %arg1: memref<1x4x324xf32, #tpu.memory_space<vmem>>, %arg2: memref<3x3x4x4xf32, #tpu.memory_space<vmem>>, %arg3: memref<1x324xf32, #tpu.memory_space<vmem>>, %arg4: memref<1x4x324xf32, #tpu.memory_space<vmem>>) attributes {dimension_semantics = [#tpu.dimension_semantics<parallel>], iteration_bounds = array<i64: 2>, scalar_prefetch = 0 : i64, scratch_operands = 0 : i64, tpu.core_type = #tpu.core_type<tc>, window_params = [{transform_indices = @transform_0, window_bounds = array<i64: 1, 4, 324>}, {pipeline_mode = #tpu.pipeline_mode<synchronous>, transform_indices = @transform_1, window_bounds = array<i64: 3, 3, 4, 4>}, {pipeline_mode = #tpu.pipeline_mode<synchronous>, transform_indices = @transform_2, window_bounds = array<i64: 1, 324>}, {transform_indices = @transform_3, window_bounds = array<i64: 1, 4, 324>}]} {
    %c0 = arith.constant 0 : index
    %c0_0 = arith.constant 0 : index
    %c0_1 = arith.constant 0 : index
    %0 = vector.load %arg1[%c0, %c0_0, %c0_1] : memref<1x4x324xf32, #tpu.memory_space<vmem>>, vector<1x4x324xf32>
    %1 = vector.shape_cast %0 : vector<1x4x324xf32> to vector<4x324xf32>
    %cst = arith.constant 0.000000e+00 : f32
    %2 = vector.broadcast %cst : f32 to vector<4x324xf32>
    %c19_i32 = arith.constant 19 : i32
    %3 = tpu.dynamic_rotate %1 by %c19_i32 dim 1 : vector<4x324xf32>, i32 -> vector<4x324xf32>
    %c0_2 = arith.constant 0 : index
    %c0_3 = arith.constant 0 : index
    %c0_4 = arith.constant 0 : index
    %c0_5 = arith.constant 0 : index
    %4 = vector.load %arg2[%c0_2, %c0_3, %c0_4, %c0_5] : memref<3x3x4x4xf32, #tpu.memory_space<vmem>>, vector<1x1x4x4xf32>
    %5 = vector.shape_cast %4 : vector<1x1x4x4xf32> to vector<4x4xf32>
    %cst_6 = arith.constant dense<0.000000e+00> : vector<4x324xf32>
    %6 = tpu.matmul %5, %3, %cst_6 {dimension_numbers = #tpu.dot_dimension_numbers<[1], [0], [0], [1], [0, 0, 1, 1], [], []>} : vector<4x4xf32>, vector<4x324xf32>, vector<4x324xf32> -> vector<4x324xf32>
    %7 = arith.addf %2, %6 : vector<4x324xf32>
    %c18_i32 = arith.constant 18 : i32
    %8 = tpu.dynamic_rotate %1 by %c18_i32 dim 1 : vector<4x324xf32>, i32 -> vector<4x324xf32>
    %c0_7 = arith.constant 0 : index
    %c1 = arith.constant 1 : index
    %c0_8 = arith.constant 0 : index
    %c0_9 = arith.constant 0 : index
    %9 = vector.load %arg2[%c0_7, %c1, %c0_8, %c0_9] : memref<3x3x4x4xf32, #tpu.memory_space<vmem>>, vector<1x1x4x4xf32>
    %10 = vector.shape_cast %9 : vector<1x1x4x4xf32> to vector<4x4xf32>
    %cst_10 = arith.constant dense<0.000000e+00> : vector<4x324xf32>
    %11 = tpu.matmul %10, %8, %cst_10 {dimension_numbers = #tpu.dot_dimension_numbers<[1], [0], [0], [1], [0, 0, 1, 1], [], []>} : vector<4x4xf32>, vector<4x324xf32>, vector<4x324xf32> -> vector<4x324xf32>
    %12 = arith.addf %7, %11 : vector<4x324xf32>
    %c17_i32 = arith.constant 17 : i32
    %13 = tpu.dynamic_rotate %1 by %c17_i32 dim 1 : vector<4x324xf32>, i32 -> vector<4x324xf32>
    %c0_11 = arith.constant 0 : index
    %c2 = arith.constant 2 : index
    %c0_12 = arith.constant 0 : index
    %c0_13 = arith.constant 0 : index
    %14 = vector.load %arg2[%c0_11, %c2, %c0_12, %c0_13] : memref<3x3x4x4xf32, #tpu.memory_space<vmem>>, vector<1x1x4x4xf32>
    %15 = vector.shape_cast %14 : vector<1x1x4x4xf32> to vector<4x4xf32>
    %cst_14 = arith.constant dense<0.000000e+00> : vector<4x324xf32>
    %16 = tpu.matmul %15, %13, %cst_14 {dimension_numbers = #tpu.dot_dimension_numbers<[1], [0], [0], [1], [0, 0, 1, 1], [], []>} : vector<4x4xf32>, vector<4x324xf32>, vector<4x324xf32> -> vector<4x324xf32>
    %17 = arith.addf %12, %16 : vector<4x324xf32>
    %c1_i32 = arith.constant 1 : i32
    %18 = tpu.dynamic_rotate %1 by %c1_i32 dim 1 : vector<4x324xf32>, i32 -> vector<4x324xf32>
    %c1_15 = arith.constant 1 : index
    %c0_16 = arith.constant 0 : index
    %c0_17 = arith.constant 0 : index
    %c0_18 = arith.constant 0 : index
    %19 = vector.load %arg2[%c1_15, %c0_16, %c0_17, %c0_18] : memref<3x3x4x4xf32, #tpu.memory_space<vmem>>, vector<1x1x4x4xf32>
    %20 = vector.shape_cast %19 : vector<1x1x4x4xf32> to vector<4x4xf32>
    %cst_19 = arith.constant dense<0.000000e+00> : vector<4x324xf32>
    %21 = tpu.matmul %20, %18, %cst_19 {dimension_numbers = #tpu.dot_dimension_numbers<[1], [0], [0], [1], [0, 0, 1, 1], [], []>} : vector<4x4xf32>, vector<4x324xf32>, vector<4x324xf32> -> vector<4x324xf32>
    %22 = arith.addf %17, %21 : vector<4x324xf32>
    %c1_20 = arith.constant 1 : index
    %c1_21 = arith.constant 1 : index
    %c0_22 = arith.constant 0 : index
    %c0_23 = arith.constant 0 : index
    %23 = vector.load %arg2[%c1_20, %c1_21, %c0_22, %c0_23] : memref<3x3x4x4xf32, #tpu.memory_space<vmem>>, vector<1x1x4x4xf32>
    %24 = vector.shape_cast %23 : vector<1x1x4x4xf32> to vector<4x4xf32>
    %cst_24 = arith.constant dense<0.000000e+00> : vector<4x324xf32>
    %25 = tpu.matmul %24, %1, %cst_24 {dimension_numbers = #tpu.dot_dimension_numbers<[1], [0], [0], [1], [0, 0, 1, 1], [], []>} : vector<4x4xf32>, vector<4x324xf32>, vector<4x324xf32> -> vector<4x324xf32>
    %26 = arith.addf %22, %25 : vector<4x324xf32>
    %c323_i32 = arith.constant 323 : i32
    %27 = tpu.dynamic_rotate %1 by %c323_i32 dim 1 : vector<4x324xf32>, i32 -> vector<4x324xf32>
    %c1_25 = arith.constant 1 : index
    %c2_26 = arith.constant 2 : index
    %c0_27 = arith.constant 0 : index
    %c0_28 = arith.constant 0 : index
    %28 = vector.load %arg2[%c1_25, %c2_26, %c0_27, %c0_28] : memref<3x3x4x4xf32, #tpu.memory_space<vmem>>, vector<1x1x4x4xf32>
    %29 = vector.shape_cast %28 : vector<1x1x4x4xf32> to vector<4x4xf32>
    %cst_29 = arith.constant dense<0.000000e+00> : vector<4x324xf32>
    %30 = tpu.matmul %29, %27, %cst_29 {dimension_numbers = #tpu.dot_dimension_numbers<[1], [0], [0], [1], [0, 0, 1, 1], [], []>} : vector<4x4xf32>, vector<4x324xf32>, vector<4x324xf32> -> vector<4x324xf32>
    %31 = arith.addf %26, %30 : vector<4x324xf32>
    %c307_i32 = arith.constant 307 : i32
    %32 = tpu.dynamic_rotate %1 by %c307_i32 dim 1 : vector<4x324xf32>, i32 -> vector<4x324xf32>
    %c2_30 = arith.constant 2 : index
    %c0_31 = arith.constant 0 : index
    %c0_32 = arith.constant 0 : index
    %c0_33 = arith.constant 0 : index
    %33 = vector.load %arg2[%c2_30, %c0_31, %c0_32, %c0_33] : memref<3x3x4x4xf32, #tpu.memory_space<vmem>>, vector<1x1x4x4xf32>
    %34 = vector.shape_cast %33 : vector<1x1x4x4xf32> to vector<4x4xf32>
    %cst_34 = arith.constant dense<0.000000e+00> : vector<4x324xf32>
    %35 = tpu.matmul %34, %32, %cst_34 {dimension_numbers = #tpu.dot_dimension_numbers<[1], [0], [0], [1], [0, 0, 1, 1], [], []>} : vector<4x4xf32>, vector<4x324xf32>, vector<4x324xf32> -> vector<4x324xf32>
    %36 = arith.addf %31, %35 : vector<4x324xf32>
    %c306_i32 = arith.constant 306 : i32
    %37 = tpu.dynamic_rotate %1 by %c306_i32 dim 1 : vector<4x324xf32>, i32 -> vector<4x324xf32>
    %c2_35 = arith.constant 2 : index
    %c1_36 = arith.constant 1 : index
    %c0_37 = arith.constant 0 : index
    %c0_38 = arith.constant 0 : index
    %38 = vector.load %arg2[%c2_35, %c1_36, %c0_37, %c0_38] : memref<3x3x4x4xf32, #tpu.memory_space<vmem>>, vector<1x1x4x4xf32>
    %39 = vector.shape_cast %38 : vector<1x1x4x4xf32> to vector<4x4xf32>
    %cst_39 = arith.constant dense<0.000000e+00> : vector<4x324xf32>
    %40 = tpu.matmul %39, %37, %cst_39 {dimension_numbers = #tpu.dot_dimension_numbers<[1], [0], [0], [1], [0, 0, 1, 1], [], []>} : vector<4x4xf32>, vector<4x324xf32>, vector<4x324xf32> -> vector<4x324xf32>
    %41 = arith.addf %36, %40 : vector<4x324xf32>
    %c305_i32 = arith.constant 305 : i32
    %42 = tpu.dynamic_rotate %1 by %c305_i32 dim 1 : vector<4x324xf32>, i32 -> vector<4x324xf32>
    %c2_40 = arith.constant 2 : index
    %c2_41 = arith.constant 2 : index
    %c0_42 = arith.constant 0 : index
    %c0_43 = arith.constant 0 : index
    %43 = vector.load %arg2[%c2_40, %c2_41, %c0_42, %c0_43] : memref<3x3x4x4xf32, #tpu.memory_space<vmem>>, vector<1x1x4x4xf32>
    %44 = vector.shape_cast %43 : vector<1x1x4x4xf32> to vector<4x4xf32>
    %cst_44 = arith.constant dense<0.000000e+00> : vector<4x324xf32>
    %45 = tpu.matmul %44, %42, %cst_44 {dimension_numbers = #tpu.dot_dimension_numbers<[1], [0], [0], [1], [0, 0, 1, 1], [], []>} : vector<4x4xf32>, vector<4x324xf32>, vector<4x324xf32> -> vector<4x324xf32>
    %46 = arith.addf %41, %45 : vector<4x324xf32>
    %c0_45 = arith.constant 0 : index
    %c0_46 = arith.constant 0 : index
    %47 = vector.load %arg3[%c0_45, %c0_46] : memref<1x324xf32, #tpu.memory_space<vmem>>, vector<1x324xf32>
    %48 = vector.broadcast %47 : vector<1x324xf32> to vector<4x324xf32>
    %49 = arith.mulf %46, %48 : vector<4x324xf32>
    %cst_47 = arith.constant dense<0.000000e+00> : vector<4xf32>
    %50 = vector.multi_reduction <add>, %49, %cst_47 [1] : vector<4x324xf32> to vector<4xf32>
    %51 = vector.shape_cast %50 : vector<4xf32> to vector<4x1xf32>
    %cst_48 = arith.constant 3.906250e-03 : f32
    %52 = vector.broadcast %cst_48 : f32 to vector<4x1xf32>
    %53 = arith.mulf %51, %52 : vector<4x1xf32>
    %54 = arith.mulf %49, %46 : vector<4x324xf32>
    %cst_49 = arith.constant dense<0.000000e+00> : vector<4xf32>
    %55 = vector.multi_reduction <add>, %54, %cst_49 [1] : vector<4x324xf32> to vector<4xf32>
    %56 = vector.shape_cast %55 : vector<4xf32> to vector<4x1xf32>
    %cst_50 = arith.constant 3.906250e-03 : f32
    %57 = vector.broadcast %cst_50 : f32 to vector<4x1xf32>
    %58 = arith.mulf %56, %57 : vector<4x1xf32>
    %59 = arith.mulf %53, %53 : vector<4x1xf32>
    %60 = arith.subf %58, %59 : vector<4x1xf32>
    %61 = vector.broadcast %53 : vector<4x1xf32> to vector<4x324xf32>
    %62 = arith.subf %46, %61 : vector<4x324xf32>
    %cst_51 = arith.constant 9.99999974E-6 : f32
    %63 = vector.broadcast %cst_51 : f32 to vector<4x1xf32>
    %64 = arith.addf %60, %63 : vector<4x1xf32>
    %65 = math.rsqrt %64 : vector<4x1xf32>
    %66 = vector.broadcast %65 : vector<4x1xf32> to vector<4x324xf32>
    %67 = arith.mulf %62, %66 : vector<4x324xf32>
    %cst_52 = arith.constant 0.000000e+00 : f32
    %68 = vector.broadcast %cst_52 : f32 to vector<4x324xf32>
    %69 = arith.maximumf %67, %68 : vector<4x324xf32>
    %70 = arith.addf %1, %69 : vector<4x324xf32>
    %c0_53 = arith.constant 0 : index
    %c0_54 = arith.constant 0 : index
    %c0_55 = arith.constant 0 : index
    %71 = vector.load %arg4[%c0_53, %c0_54, %c0_55] : memref<1x4x324xf32, #tpu.memory_space<vmem>>, vector<1x4x324xf32>
    %72 = vector.shape_cast %71 : vector<1x4x324xf32> to vector<4x324xf32>
    %73 = vector.shape_cast %70 : vector<4x324xf32> to vector<1x4x324xf32>
    tpu.vector_store %arg4[%c0_53, %c0_54, %c0_55], %73 {strides = array<i32>} : memref<1x4x324xf32, #tpu.memory_space<vmem>>, vector<1x4x324xf32>,
    return
  }
  func.func @transform_0(%arg0: i32) -> (i32, i32, i32) {
    %c0_i32 = arith.constant 0 : i32
    %c0_i32_0 = arith.constant 0 : i32
    %c0_i32_1 = arith.constant 0 : i32
    return %arg0, %c0_i32, %c0_i32_0 : i32, i32, i32
  }
  func.func @transform_1(%arg0: i32) -> (i32, i32, i32, i32) {
    %c0_i32 = arith.constant 0 : i32
    %c0_i32_0 = arith.constant 0 : i32
    %c0_i32_1 = arith.constant 0 : i32
    %c0_i32_2 = arith.constant 0 : i32
    %c0_i32_3 = arith.constant 0 : i32
    return %c0_i32, %c0_i32_0, %c0_i32_1, %c0_i32_2 : i32, i32, i32, i32
  }
  func.func @transform_2(%arg0: i32) -> (i32, i32) {
    %c0_i32 = arith.constant 0 : i32
    %c0_i32_0 = arith.constant 0 : i32
    %c0_i32_1 = arith.constant 0 : i32
    return %c0_i32, %c0_i32_0 : i32, i32
  }
  func.func @transform_3(%arg0: i32) -> (i32, i32, i32) {
    %c0_i32 = arith.constant 0 : i32
    %c0_i32_0 = arith.constant 0 : i32
    %c0_i32_1 = arith.constant 0 : i32
    return %arg0, %c0_i32, %c0_i32_0 : i32, i32, i32
  }
}

</mosaic_0001>

<llo_original>
// kernel: tpu_custom_call.1
$region0: #{tpu_custom_call.1}
  #allocation0 [shape = 'u32[]', space=smem, size = 0x4, offset = 0x4, fixed_abs, tag = 'smem constant byte address 0x4 - core index']
  #allocation1 [shape = 'u32[144,128]{1,0:T(1,128)}', space=vmem, size = 0x12000, scoped, tag = 'internal scratch']
  %s0 = inlined_call_operand.hbm [shape: f32[2,4,324], index: 0, kind: input, shape index: {}]
  %s1 = inlined_call_operand.hbm [shape: f32[3,3,4,4], index: 1, kind: input, shape index: {}]
  %s2 = inlined_call_operand.vmem [shape: f32[1,324], index: 2, kind: input, shape index: {}]
  %s3 = inlined_call_operand.hbm [shape: f32[2,4,324], index: 3, kind: output, shape index: {}]
  %s4 = sld [smem:[#allocation0]]
  $region53: #{tpu_custom_call.1} parent=0
    _
  %s6 = ssub.s32 1, %s4
  %s7 = scalar_select 0, %s6, %s4
  $region1: #{tpu_custom_call.1} parent=0
    #allocation2 [shape = 'u8[12288]{0}', space=vmem, size = 0x3000, scoped, tag = 'input window, operand 0']
    #allocation3 [shape = 's32[2]{0}', space=sflag, size = 0x8, scoped, tag = 'scoped memory for tpu_custom_call.1']
    #allocation4 [shape = 's32[2]{0}', space=sflag, size = 0x8, scoped, tag = 'scoped memory for tpu_custom_call.1']
    #allocation5 [shape = 'u8[18432]{0}', space=vmem, size = 0x4800, scoped, tag = 'input window, operand 1, single buffered']
    #allocation6 [shape = 's32[1]{0}', space=sflag, size = 0x4, scoped, tag = 'scoped memory for tpu_custom_call.1']
    #allocation7 [shape = 'u8[12288]{0}', space=vmem, size = 0x3000, scoped, tag = 'output window, operand 0']
    %8 = vsyncpa [#allocation3], 0
    %s9 = scalar_lea.sflag [#allocation3], 1
    %10 = vsyncpa %s9, 0
    %11 = vsyncpa [#allocation6], 0
    %12 = vsyncpa [#allocation4], 0
    %s13 = scalar_lea.sflag [#allocation4], 1
    %14 = vsyncpa %s13, 0
    loop: start=0, step=1, limit=4
    $region2: #{tpu_custom_call.1} parent=1 // loop_pre_header
      _
    $region3: #{tpu_custom_call.1} parent=1 // loop_header
      %s16 = sphi 0, %s20
      %p17 = scmp.ge.s32.totalorder %s16, 4
      %s26 = sphi 0, %s28
      %s29 = sphi 0, %s26
      %s30 = sphi 0, %s29
      %s46 = sphi 0, %s30
      %s50 = sphi 0, %s50
      %s52 = sphi 0, %s50
      %s53 = sphi 0, %s52
      %s67 = sphi 0, %s53
      %s71 = sphi 0, %s71
      %s73 = sphi 0, %s71
      %s74 = sphi 0, %s73
      %s88 = sphi 0, %s74
      %s94 = sphi 0, %s96
      %s97 = sphi 0, %s94
      %s98 = sphi 0, %s97
      %s114 = sphi 0, %s98
    $region4: #{tpu_custom_call.1} parent=1 // loop_header_branch
      %19 = sbr.rel (%p17) target = $region8
    $region5: #{tpu_custom_call.1} parent=1 // loop_body
      %s21 = ssub.s32 %s16, 1
      %s22 = ssub.s32 %s16, 2
      %s23 = sadd.s32 %s16, 1
      %s24 = ssub.s32 %s16, %s23
      %p25 = scmp.eq.s32.totalorder %s24, 0
      %s27 = sadd.s32 %s26, 1
      %s28 = scalar_select %p25, %s26, %s27
      %p31 = pneg %p25
      %p32 = scmp.eq.s32.totalorder %s16, 1
      %p33 = por %p31, %p32
      %p34 = scmp.ne.s32.totalorder %s26, %s29
      %p35 = scmp.eq.s32.totalorder %s16, 0
      %p36 = por %p34, %p35
      %p37 = scmp.ne.s32.totalorder %s26, %s29
      %p38 = scmp.eq.s32.totalorder %s21, 1
      %p39 = por %p37, %p38
      %p40 = scmp.ne.s32.totalorder %s29, %s30
      %p41 = scmp.eq.s32.totalorder %s21, 0
      %p42 = por %p40, %p41
      %p43 = scmp.ne.s32.totalorder %s29, %s30
      %p44 = scmp.eq.s32.totalorder %s22, 1
      %p45 = por %p43, %p44
      %p47 = scmp.ne.s32.totalorder %s30, %s46
      %p48 = scmp.eq.s32.totalorder %s22, 0
      %p49 = por %p47, %p48
      %s51 = sadd.s32 %s50, 1
      %p54 = scmp.eq.s32.totalorder %s16, 1
      %p55 = scmp.ne.s32.totalorder %s50, %s52
      %p56 = scmp.eq.s32.totalorder %s16, 0
      %p57 = por %p55, %p56
      %p58 = scmp.ne.s32.totalorder %s50, %s52
      %p59 = scmp.eq.s32.totalorder %s21, 1
      %p60 = por %p58, %p59
      %p61 = scmp.ne.s32.totalorder %s52, %s53
      %p62 = scmp.eq.s32.totalorder %s21, 0
      %p63 = por %p61, %p62
      %p64 = scmp.ne.s32.totalorder %s52, %s53
      %p65 = scmp.eq.s32.totalorder %s22, 1
      %p66 = por %p64, %p65
      %p68 = scmp.ne.s32.totalorder %s53, %s67
      %p69 = scmp.eq.s32.totalorder %s22, 0
      %p70 = por %p68, %p69
      %s72 = sadd.s32 %s71, 1
      %p75 = scmp.eq.s32.totalorder %s16, 1
      %p76 = scmp.ne.s32.totalorder %s71, %s73
      %p77 = scmp.eq.s32.totalorder %s16, 0
      %p78 = por %p76, %p77
      %p79 = scmp.ne.s32.totalorder %s71, %s73
      %p80 = scmp.eq.s32.totalorder %s21, 1
      %p81 = por %p79, %p80
      %p82 = scmp.ne.s32.totalorder %s73, %s74
      %p83 = scmp.eq.s32.totalorder %s21, 0
      %p84 = por %p82, %p83
      %p85 = scmp.ne.s32.totalorder %s73, %s74
      %p86 = scmp.eq.s32.totalorder %s22, 1
      %p87 = por %p85, %p86
      %p89 = scmp.ne.s32.totalorder %s74, %s88
      %p90 = scmp.eq.s32.totalorder %s22, 0
      %p91 = por %p89, %p90
      %s92 = ssub.s32 %s16, %s23
      %p93 = scmp.eq.s32.totalorder %s92, 0
      %s95 = sadd.s32 %s94, 1
      %s96 = scalar_select %p93, %s94, %s95
      %p99 = pneg %p93
      %p100 = scmp.eq.s32.totalorder %s16, 1
      %p101 = por %p99, %p100
      %p102 = scmp.ne.s32.totalorder %s94, %s97
      %p103 = scmp.eq.s32.totalorder %s16, 0
      %p104 = por %p102, %p103
      %p105 = scmp.ne.s32.totalorder %s94, %s97
      %p106 = scmp.eq.s32.totalorder %s21, 1
      %p107 = por %p105, %p106
      %p108 = scmp.ne.s32.totalorder %s97, %s98
      %p109 = scmp.eq.s32.totalorder %s21, 0
      %p110 = por %p108, %p109
      %p111 = scmp.ne.s32.totalorder %s97, %s98
      %p112 = scmp.eq.s32.totalorder %s22, 1
      %p113 = por %p111, %p112
      %p115 = scmp.ne.s32.totalorder %s98, %s114
      %p116 = scmp.eq.s32.totalorder %s22, 0
      %p117 = por %p115, %p116
      %p118 = scmp.le.s32.totalorder 1, %s16
      %p119 = scmp.lt.s32.totalorder %s16, 3
      %p120 = pnand %p118, %p119
      %p121 = pneg %p120
      // Predicated region
      $region9: #{tpu_custom_call.1} parent=5 // pred_check
        _
      $region10: #{tpu_custom_call.1} parent=5 // pred_check_branch
        %123 = sbr.rel (%p120) target = $region12
      $region11: #{tpu_custom_call.1} parent=5 // pred_region
        %s124 = ssub.s32 %s16, 1
        // Predicated region
        $region13: #{tpu_custom_call.1} parent=11 // pred_check
          %p125 = pneg %p63
        $region14: #{tpu_custom_call.1} parent=11 // pred_check_branch
          %127 = sbr.rel (%p125) target = $region16
        $region15: #{tpu_custom_call.1} parent=11 // pred_region
          %s129 = ssub.s32 576, 576
          %130 = vsyncadd [#allocation6], %s129
          %s131 = sshll.u32 [#allocation5], 4
          %s132 = int_to_ptr.vmem [resolvable:$true] %s131
          %137 = dma.hbm_to_vmem [thread:$0]  %s1, 576, %s132, [#allocation6], 64, 64, 4
        $region16: #{tpu_custom_call.1} parent=11 // pred_fallthru
          _
        // Predicated region
        $region17: #{tpu_custom_call.1} parent=11 // pred_check
          %p138 = pneg %p84
        $region18: #{tpu_custom_call.1} parent=11 // pred_check_branch
          %140 = sbr.rel (%p138) target = $region20
        $region19: #{tpu_custom_call.1} parent=11 // pred_region
          _
        $region20: #{tpu_custom_call.1} parent=11 // pred_fallthru
          _
      $region12: #{tpu_custom_call.1} parent=5 // pred_fallthru
        _
      %p141 = scmp.lt.s32.totalorder %s16, 2
      // Predicated region
      $region21: #{tpu_custom_call.1} parent=5 // pred_check
        %p142 = pneg %p141
      $region22: #{tpu_custom_call.1} parent=5 // pred_check_branch
        %144 = sbr.rel (%p142) target = $region24
      $region23: #{tpu_custom_call.1} parent=5 // pred_region
        // Predicated region
        $region25: #{tpu_custom_call.1} parent=23 // pred_check
          %p145 = pneg %p36
        $region26: #{tpu_custom_call.1} parent=23 // pred_check_branch
          %147 = sbr.rel (%p145) target = $region28
        $region27: #{tpu_custom_call.1} parent=23 // pred_region
          %s148 = sand.u32 %s26, 1
          %s149 = scalar_lea.sflag [#allocation3], %s148
          %s150 = sand.u32 %s26, 1
          %s151 = smul.addr %s150, 12
          %s152 = scalar_lea.vmem [#allocation2], %s151
          %s154 = ssub.s32 192, 192
          %155 = vsyncadd %s149, %s154
          %s156 = smul.addr %s16, 3
          %s157 = smul.addr %s156, 64
          %s158 = scalar_lea.hbm %s0, %s157
          %s160 = sshll.u32 %s152, 4
          %s161 = int_to_ptr.vmem [resolvable:$true] %s160
          %163 = dma.hbm_to_vmem [thread:$0]  %s158, 192, %s161, %s149
        $region28: #{tpu_custom_call.1} parent=23 // pred_fallthru
          _
      $region24: #{tpu_custom_call.1} parent=5 // pred_fallthru
        _
      %p164 = scmp.le.s32.totalorder 1, %s16
      %p165 = scmp.lt.s32.totalorder %s16, 3
      %p166 = pnand %p164, %p165
      %p167 = pneg %p166
      // Predicated region
      $region29: #{tpu_custom_call.1} parent=5 // pred_check
        _
      $region30: #{tpu_custom_call.1} parent=5 // pred_check_branch
        %169 = sbr.rel (%p166) target = $region32
      $region31: #{tpu_custom_call.1} parent=5 // pred_region
        %s170 = ssub.s32 %s16, 1
        %s171 = sand.u32 %s29, 1
        %s172 = scalar_lea.sflag [#allocation3], %s171
        %s173 = sand.u32 %s29, 1
        %s174 = smul.addr %s173, 12
        %s175 = scalar_lea.vmem [#allocation2], %s174
        // Predicated region
        $region33: #{tpu_custom_call.1} parent=31 // pred_check
          %p176 = pneg %p42
        $region34: #{tpu_custom_call.1} parent=31 // pred_check_branch
          %178 = sbr.rel (%p176) target = $region36
        $region35: #{tpu_custom_call.1} parent=31 // pred_region
          %179 = dma.done %s172, 192
        $region36: #{tpu_custom_call.1} parent=31 // pred_fallthru
          _
        // Predicated region
        $region37: #{tpu_custom_call.1} parent=31 // pred_check
          %p180 = pneg %p63
        $region38: #{tpu_custom_call.1} parent=31 // pred_check_branch
          %182 = sbr.rel (%p180) target = $region40
        $region39: #{tpu_custom_call.1} parent=31 // pred_region
          %183 = dma.done [#allocation6], 576
        $region40: #{tpu_custom_call.1} parent=31 // pred_fallthru
          _
        %s184 = sand.u32 %s29, 1
        %s185 = scalar_lea.sflag [#allocation3], %s184
        %s186 = sand.u32 %s29, 1
        %s187 = smul.addr %s186, 12
        %s188 = scalar_lea.vmem [#allocation2], %s187
        %p189 = pneg %p42
        %p190 = pneg %p39
        %p191 = pneg %p63
        %p192 = pneg %p60
        %p193 = pneg %p84
        %p194 = pneg %p81
        %p195 = pneg %p110
        %p196 = pneg %p107
        %s197 = sand.u32 %s97, 1
        %s198 = scalar_lea.sflag [#allocation4], %s197
        %s199 = sand.u32 %s97, 1
        %s200 = smul.addr %s199, 12
        %s201 = scalar_lea.vmem [#allocation7], %s200
        %v202 = vld [vmem:[%s175] sm:$0xff]
        %v203 = vld [vmem:[%s175 + $0x8] sm:$0xf]
        %v206 = vcombine.high %v202, %v202
        %vm208 = vcmask 1048096
        %209 = vrot.lane.b32.xlu0 %v202, 68
        %v210 = vpop.permute.xlu0 %209
        %v211 = vsel %vm208, %v210, %v203
        %212 = vrot.lane.b32.xlu0 %v206, 68
        %v213 = vpop.permute.xlu0 %212
        %214 = vrot.lane.b32.xlu0 %v211, 68
        %v215 = vpop.permute.xlu0 %214
        %v216 = vsel %vm208, %v213, %v210
        %v217 = vsel %vm208, %v215, %v213
        %v218 = vld [vmem:[#allocation5] sm:$0xf]
        %s219 = scalar_lea.vmem [#allocation5], 4
        %v220 = vld [vmem:[%s219] sm:$0xf]
        %224 = vrot.lane.b32.xlu0 %v211, 78
        %v225 = vpop.permute.xlu0 %224
        %226 = vrot.lane.b32.xlu0 %v216, 78
        %v227 = vpop.permute.xlu0 %226
        %228 = vrot.lane.b32.xlu0 %v217, 78
        %v229 = vpop.permute.xlu0 %228
        %vm230 = vcmask 637952
        %v231 = vsel %vm230, %v225, %v227
        %v232 = vsel %vm230, %v227, %v229
        %vm233 = vcmask 31744
        %v235 = vsel %vm233, %v220, 0
        %vm237 = vcmask 1043456
        %v238 = vsel %vm237, %v231, 0
        %v240 = vsel %vm237, %v232, 0
        %v242 = vsel %vm237, %v229, 0
        %244 = vmatprep.subr.mxu0 %v240
        %245 = vmatpush1.msra.mxu0 %v238
        %246 = vmatprep.subr.mxu0 0.0
        %247 = vmatpush1.msra.mxu0 0.0
        %248 = vmatprep.subr.mxu0 0.0
        %249 = vmatpush1.msra.mxu0 0.0
        %250 = vmatprep.subr.mxu0 0.0
        %251 = vmatpush1.msra.mxu0 0.0
        %252 = vmatprep.subr.mxu0 0.0
        %253 = vmatpush1.msra.mxu0 0.0
        %254 = vmatprep.subr.mxu0 0.0
        %255 = vmatpush1.msra.mxu0 0.0
        %256 = vmatprep.subr.mxu0 0.0
        %257 = vmatpush1.msra.mxu0 0.0
        %258 = vmatprep.subr.mxu0 0.0
        %259 = vmatpush1.msra.mxu0 0.0
        %260 = vmatprep.subr.mxu0 0.0
        %261 = vmatpush1.msra.mxu0 0.0
        %262 = vmatprep.subr.mxu0 0.0
        %263 = vmatpush1.msra.mxu0 0.0
        %264 = vmatprep.subr.mxu0 0.0
        %265 = vmatpush1.msra.mxu0 0.0
        %266 = vmatprep.subr.mxu0 0.0
        %267 = vmatpush1.msra.mxu0 0.0
        %268 = vmatprep.subr.mxu0 0.0
        %269 = vmatpush1.msra.mxu0 0.0
        %270 = vmatprep.subr.mxu0 0.0
        %271 = vmatpush1.msra.mxu0 0.0
        %272 = vmatprep.subr.mxu0 0.0
        %273 = vmatpush1.msra.mxu0 0.0
        %274 = vmatprep.subr.mxu0 0.0
        %275 = vmatpush1.msra.mxu0 0.0
        %276 = vmatprep.subr.mxu0 0.0
        %277 = vmatpush1.msra.mxu0 0.0
        %278 = vmatprep.subr.mxu0 0.0
        %279 = vmatpush1.msra.mxu0 0.0
        %280 = vmatprep.subr.mxu0 0.0
        %281 = vmatpush1.msra.mxu0 0.0
        %282 = vmatprep.subr.mxu0 0.0
        %283 = vmatpush1.msra.mxu0 0.0
        %284 = vmatprep.subr.mxu0 0.0
        %285 = vmatpush1.msra.mxu0 0.0
        %286 = vmatprep.subr.mxu0 0.0
        %287 = vmatpush1.msra.mxu0 0.0
        %288 = vmatprep.subr.mxu0 0.0
        %289 = vmatpush1.msra.mxu0 0.0
        %290 = vmatprep.subr.mxu0 0.0
        %291 = vmatpush1.msra.mxu0 0.0
        %292 = vmatprep.subr.mxu0 0.0
        %293 = vmatpush1.msra.mxu0 0.0
        %294 = vmatprep.subr.mxu0 0.0
        %295 = vmatpush1.msra.mxu0 0.0
        %296 = vmatprep.subr.mxu0 0.0
        %297 = vmatpush1.msra.mxu0 0.0
        %298 = vmatprep.subr.mxu0 0.0
        %299 = vmatpush1.msra.mxu0 0.0
        %300 = vmatprep.subr.mxu0 0.0
        %301 = vmatpush1.msra.mxu0 0.0
        %302 = vmatprep.subr.mxu0 0.0
        %303 = vmatpush1.msra.mxu0 0.0
        %304 = vmatprep.subr.mxu0 0.0
        %305 = vmatpush1.msra.mxu0 0.0
        %306 = vmatprep.subr.mxu0 0.0
        %307 = vmatpush1.msra.mxu0 0.0
        %308 = vmatprep.mubr.f32.mxu0 0.0
        %309 = vmatmul.mubr.f32.gmra.mrb[0].mxu0 %v235
        %v310 = vpop.f32.mrb[0].mxu0
        %v311 = vadd.f32 0.0, %v310
        %v312 = vpop.f32.mrb[0].mxu0
        %v313 = vadd.f32 0.0, %v312
        %314 = vdwg.mxu0
        %315 = vmatprep.subr.mxu0 0.0
        %316 = vmatpush1.msra.mxu0 %v242
        %317 = vmatprep.subr.mxu0 0.0
        %318 = vmatpush1.msra.mxu0 0.0
        %319 = vmatprep.subr.mxu0 0.0
        %320 = vmatpush1.msra.mxu0 0.0
        %321 = vmatprep.subr.mxu0 0.0
        %322 = vmatpush1.msra.mxu0 0.0
        %323 = vmatprep.subr.mxu0 0.0
        %324 = vmatpush1.msra.mxu0 0.0
        %325 = vmatprep.subr.mxu0 0.0
        %326 = vmatpush1.msra.mxu0 0.0
        %327 = vmatprep.subr.mxu0 0.0
        %328 = vmatpush1.msra.mxu0 0.0
        %329 = vmatprep.subr.mxu0 0.0
        %330 = vmatpush1.msra.mxu0 0.0
        %331 = vmatprep.subr.mxu0 0.0
        %332 = vmatpush1.msra.mxu0 0.0
        %333 = vmatprep.subr.mxu0 0.0
        %334 = vmatpush1.msra.mxu0 0.0
        %335 = vmatprep.subr.mxu0 0.0
        %336 = vmatpush1.msra.mxu0 0.0
        %337 = vmatprep.subr.mxu0 0.0
        %338 = vmatpush1.msra.mxu0 0.0
        %339 = vmatprep.subr.mxu0 0.0
        %340 = vmatpush1.msra.mxu0 0.0
        %341 = vmatprep.subr.mxu0 0.0
        %342 = vmatpush1.msra.mxu0 0.0
        %343 = vmatprep.subr.mxu0 0.0
        %344 = vmatpush1.msra.mxu0 0.0
        %345 = vmatprep.subr.mxu0 0.0
        %346 = vmatpush1.msra.mxu0 0.0
        %347 = vmatprep.subr.mxu0 0.0
        %348 = vmatpush1.msra.mxu0 0.0
        %349 = vmatprep.subr.mxu0 0.0
        %350 = vmatpush1.msra.mxu0 0.0
        %351 = vmatprep.subr.mxu0 0.0
        %352 = vmatpush1.msra.mxu0 0.0
        %353 = vmatprep.subr.mxu0 0.0
        %354 = vmatpush1.msra.mxu0 0.0
        %355 = vmatprep.subr.mxu0 0.0
        %356 = vmatpush1.msra.mxu0 0.0
        %357 = vmatprep.subr.mxu0 0.0
        %358 = vmatpush1.msra.mxu0 0.0
        %359 = vmatprep.subr.mxu0 0.0
        %360 = vmatpush1.msra.mxu0 0.0
        %361 = vmatprep.subr.mxu0 0.0
        %362 = vmatpush1.msra.mxu0 0.0
        %363 = vmatprep.subr.mxu0 0.0
        %364 = vmatpush1.msra.mxu0 0.0
        %365 = vmatprep.subr.mxu0 0.0
        %366 = vmatpush1.msra.mxu0 0.0
        %367 = vmatprep.subr.mxu0 0.0
        %368 = vmatpush1.msra.mxu0 0.0
        %369 = vmatprep.subr.mxu0 0.0
        %370 = vmatpush1.msra.mxu0 0.0
        %371 = vmatprep.subr.mxu0 0.0
        %372 = vmatpush1.msra.mxu0 0.0
        %373 = vmatprep.subr.mxu0 0.0
        %374 = vmatpush1.msra.mxu0 0.0
        %375 = vmatprep.subr.mxu0 0.0
        %376 = vmatpush1.msra.mxu0 0.0
        %377 = vmatprep.subr.mxu0 0.0
        %378 = vmatpush1.msra.mxu0 0.0
        %379 = vmatprep.mubr.f32.mxu0 0.0
        %380 = vmatmul.mubr.f32.gmra.mrb[0].mxu0 %v235
        %v381 = vpop.f32.mrb[0].mxu0
        %v382 = vadd.f32 0.0, %v381
        %v383 = vpop.f32.mrb[0].mxu0
        %384 = vdwg.mxu0
        %385 = vrot.lane.b32.xlu0 %v211, 79
        %v386 = vpop.permute.xlu0 %385
        %387 = vrot.lane.b32.xlu0 %v216, 79
        %v388 = vpop.permute.xlu0 %387
        %389 = vrot.lane.b32.xlu0 %v217, 79
        %v390 = vpop.permute.xlu0 %389
        %vm391 = vcmask 646144
        %v392 = vsel %vm391, %v386, %v388
        %v393 = vsel %vm391, %v388, %v390
        %v395 = vsel %vm233, %v218, 0
        %v397 = vsel %vm237, %v392, 0
        %v399 = vsel %vm237, %v393, 0
        %v401 = vsel %vm237, %v390, 0
        %403 = vmatprep.subr.mxu0 %v399
        %404 = vmatpush1.msra.mxu0 %v397
        %405 = vmatprep.subr.mxu0 0.0
        %406 = vmatpush1.msra.mxu0 0.0
        %407 = vmatprep.subr.mxu0 0.0
        %408 = vmatpush1.msra.mxu0 0.0
        %409 = vmatprep.subr.mxu0 0.0
        %410 = vmatpush1.msra.mxu0 0.0
        %411 = vmatprep.subr.mxu0 0.0
        %412 = vmatpush1.msra.mxu0 0.0
        %413 = vmatprep.subr.mxu0 0.0
        %414 = vmatpush1.msra.mxu0 0.0
        %415 = vmatprep.subr.mxu0 0.0
        %416 = vmatpush1.msra.mxu0 0.0
        %417 = vmatprep.subr.mxu0 0.0
        %418 = vmatpush1.msra.mxu0 0.0
        %419 = vmatprep.subr.mxu0 0.0
        %420 = vmatpush1.msra.mxu0 0.0
        %421 = vmatprep.subr.mxu0 0.0
        %422 = vmatpush1.msra.mxu0 0.0
        %423 = vmatprep.subr.mxu0 0.0
        %424 = vmatpush1.msra.mxu0 0.0
        %425 = vmatprep.subr.mxu0 0.0
        %426 = vmatpush1.msra.mxu0 0.0
        %427 = vmatprep.subr.mxu0 0.0
        %428 = vmatpush1.msra.mxu0 0.0
        %429 = vmatprep.subr.mxu0 0.0
        %430 = vmatpush1.msra.mxu0 0.0
        %431 = vmatprep.subr.mxu0 0.0
        %432 = vmatpush1.msra.mxu0 0.0
        %433 = vmatprep.subr.mxu0 0.0
        %434 = vmatpush1.msra.mxu0 0.0
        %435 = vmatprep.subr.mxu0 0.0
        %436 = vmatpush1.msra.mxu0 0.0
        %437 = vmatprep.subr.mxu0 0.0
        %438 = vmatpush1.msra.mxu0 0.0
        %439 = vmatprep.subr.mxu0 0.0
        %440 = vmatpush1.msra.mxu0 0.0
        %441 = vmatprep.subr.mxu0 0.0
        %442 = vmatpush1.msra.mxu0 0.0
        %443 = vmatprep.subr.mxu0 0.0
        %444 = vmatpush1.msra.mxu0 0.0
        %445 = vmatprep.subr.mxu0 0.0
        %446 = vmatpush1.msra.mxu0 0.0
        %447 = vmatprep.subr.mxu0 0.0
        %448 = vmatpush1.msra.mxu0 0.0
        %449 = vmatprep.subr.mxu0 0.0
        %450 = vmatpush1.msra.mxu0 0.0
        %451 = vmatprep.subr.mxu0 0.0
        %452 = vmatpush1.msra.mxu0 0.0
        %453 = vmatprep.subr.mxu0 0.0
        %454 = vmatpush1.msra.mxu0 0.0
        %455 = vmatprep.subr.mxu0 0.0
        %456 = vmatpush1.msra.mxu0 0.0
        %457 = vmatprep.subr.mxu0 0.0
        %458 = vmatpush1.msra.mxu0 0.0
        %459 = vmatprep.subr.mxu0 0.0
        %460 = vmatpush1.msra.mxu0 0.0
        %461 = vmatprep.subr.mxu0 0.0
        %462 = vmatpush1.msra.mxu0 0.0
        %463 = vmatprep.subr.mxu0 0.0
        %464 = vmatpush1.msra.mxu0 0.0
        %465 = vmatprep.subr.mxu0 0.0
        %466 = vmatpush1.msra.mxu0 0.0
        %467 = vmatprep.mubr.f32.mxu0 0.0
        %468 = vmatmul.mubr.f32.gmra.mrb[0].mxu0 %v395
        %v469 = vpop.f32.mrb[0].mxu0
        %v470 = vadd.f32 %v311, %v469
        %v471 = vpop.f32.mrb[0].mxu0
        %v472 = vadd.f32 %v313, %v471
        %473 = vdwg.mxu0
        %474 = vmatprep.subr.mxu0 0.0
        %475 = vmatpush1.msra.mxu0 %v401
        %476 = vmatprep.subr.mxu0 0.0
        %477 = vmatpush1.msra.mxu0 0.0
        %478 = vmatprep.subr.mxu0 0.0
        %479 = vmatpush1.msra.mxu0 0.0
        %480 = vmatprep.subr.mxu0 0.0
        %481 = vmatpush1.msra.mxu0 0.0
        %482 = vmatprep.subr.mxu0 0.0
        %483 = vmatpush1.msra.mxu0 0.0
        %484 = vmatprep.subr.mxu0 0.0
        %485 = vmatpush1.msra.mxu0 0.0
        %486 = vmatprep.subr.mxu0 0.0
        %487 = vmatpush1.msra.mxu0 0.0
        %488 = vmatprep.subr.mxu0 0.0
        %489 = vmatpush1.msra.mxu0 0.0
        %490 = vmatprep.subr.mxu0 0.0
        %491 = vmatpush1.msra.mxu0 0.0
        %492 = vmatprep.subr.mxu0 0.0
        %493 = vmatpush1.msra.mxu0 0.0
        %494 = vmatprep.subr.mxu0 0.0
        %495 = vmatpush1.msra.mxu0 0.0
        %496 = vmatprep.subr.mxu0 0.0
        %497 = vmatpush1.msra.mxu0 0.0
        %498 = vmatprep.subr.mxu0 0.0
        %499 = vmatpush1.msra.mxu0 0.0
        %500 = vmatprep.subr.mxu0 0.0
        %501 = vmatpush1.msra.mxu0 0.0
        %502 = vmatprep.subr.mxu0 0.0
        %503 = vmatpush1.msra.mxu0 0.0
        %504 = vmatprep.subr.mxu0 0.0
        %505 = vmatpush1.msra.mxu0 0.0
        %506 = vmatprep.subr.mxu0 0.0
        %507 = vmatpush1.msra.mxu0 0.0
        %508 = vmatprep.subr.mxu0 0.0
        %509 = vmatpush1.msra.mxu0 0.0
        %510 = vmatprep.subr.mxu0 0.0
        %511 = vmatpush1.msra.mxu0 0.0
        %512 = vmatprep.subr.mxu0 0.0
        %513 = vmatpush1.msra.mxu0 0.0
        %514 = vmatprep.subr.mxu0 0.0
        %515 = vmatpush1.msra.mxu0 0.0
        %516 = vmatprep.subr.mxu0 0.0
        %517 = vmatpush1.msra.mxu0 0.0
        %518 = vmatprep.subr.mxu0 0.0
        %519 = vmatpush1.msra.mxu0 0.0
        %520 = vmatprep.subr.mxu0 0.0
        %521 = vmatpush1.msra.mxu0 0.0
        %522 = vmatprep.subr.mxu0 0.0
        %523 = vmatpush1.msra.mxu0 0.0
        %524 = vmatprep.subr.mxu0 0.0
        %525 = vmatpush1.msra.mxu0 0.0
        %526 = vmatprep.subr.mxu0 0.0
        %527 = vmatpush1.msra.mxu0 0.0
        %528 = vmatprep.subr.mxu0 0.0
        %529 = vmatpush1.msra.mxu0 0.0
        %530 = vmatprep.subr.mxu0 0.0
        %531 = vmatpush1.msra.mxu0 0.0
        %532 = vmatprep.subr.mxu0 0.0
        %533 = vmatpush1.msra.mxu0 0.0
        %534 = vmatprep.subr.mxu0 0.0
        %535 = vmatpush1.msra.mxu0 0.0
        %536 = vmatprep.subr.mxu0 0.0
        %537 = vmatpush1.msra.mxu0 0.0
        %538 = vmatprep.mubr.f32.mxu0 0.0
        %539 = vmatmul.mubr.f32.gmra.mrb[0].mxu0 %v395
        %v540 = vpop.f32.mrb[0].mxu0
        %v541 = vadd.f32 %v382, %v540
        %v542 = vpop.f32.mrb[0].mxu0
        %543 = vdwg.mxu0
        %s544 = scalar_lea.vmem [#allocation5], 8
        %v545 = vld [vmem:[%s544] sm:$0xf]
        %546 = vrot.lane.b32.xlu0 %v211, 77
        %v547 = vpop.permute.xlu0 %546
        %548 = vrot.lane.b32.xlu0 %v216, 77
        %v549 = vpop.permute.xlu0 %548
        %550 = vrot.lane.b32.xlu0 %v217, 77
        %v551 = vpop.permute.xlu0 %550
        %vm552 = vcmask 629760
        %v553 = vsel %vm552, %v547, %v549
        %v554 = vsel %vm552, %v549, %v551
        %v556 = vsel %vm233, %v545, 0
        %v558 = vsel %vm237, %v553, 0
        %v560 = vsel %vm237, %v554, 0
        %v562 = vsel %vm237, %v551, 0
        %564 = vmatprep.subr.mxu0 %v560
        %565 = vmatpush1.msra.mxu0 %v558
        %566 = vmatprep.subr.mxu0 0.0
        %567 = vmatpush1.msra.mxu0 0.0
        %568 = vmatprep.subr.mxu0 0.0
        %569 = vmatpush1.msra.mxu0 0.0
        %570 = vmatprep.subr.mxu0 0.0
        %571 = vmatpush1.msra.mxu0 0.0
        %572 = vmatprep.subr.mxu0 0.0
        %573 = vmatpush1.msra.mxu0 0.0
        %574 = vmatprep.subr.mxu0 0.0
        %575 = vmatpush1.msra.mxu0 0.0
        %576 = vmatprep.subr.mxu0 0.0
        %577 = vmatpush1.msra.mxu0 0.0
        %578 = vmatprep.subr.mxu0 0.0
        %579 = vmatpush1.msra.mxu0 0.0
        %580 = vmatprep.subr.mxu0 0.0
        %581 = vmatpush1.msra.mxu0 0.0
        %582 = vmatprep.subr.mxu0 0.0
        %583 = vmatpush1.msra.mxu0 0.0
        %584 = vmatprep.subr.mxu0 0.0
        %585 = vmatpush1.msra.mxu0 0.0
        %586 = vmatprep.subr.mxu0 0.0
        %587 = vmatpush1.msra.mxu0 0.0
        %588 = vmatprep.subr.mxu0 0.0
        %589 = vmatpush1.msra.mxu0 0.0
        %590 = vmatprep.subr.mxu0 0.0
        %591 = vmatpush1.msra.mxu0 0.0
        %592 = vmatprep.subr.mxu0 0.0
        %593 = vmatpush1.msra.mxu0 0.0
        %594 = vmatprep.subr.mxu0 0.0
        %595 = vmatpush1.msra.mxu0 0.0
        %596 = vmatprep.subr.mxu0 0.0
        %597 = vmatpush1.msra.mxu0 0.0
        %598 = vmatprep.subr.mxu0 0.0
        %599 = vmatpush1.msra.mxu0 0.0
        %600 = vmatprep.subr.mxu0 0.0
        %601 = vmatpush1.msra.mxu0 0.0
        %602 = vmatprep.subr.mxu0 0.0
        %603 = vmatpush1.msra.mxu0 0.0
        %604 = vmatprep.subr.mxu0 0.0
        %605 = vmatpush1.msra.mxu0 0.0
        %606 = vmatprep.subr.mxu0 0.0
        %607 = vmatpush1.msra.mxu0 0.0
        %608 = vmatprep.subr.mxu0 0.0
        %609 = vmatpush1.msra.mxu0 0.0
        %610 = vmatprep.subr.mxu0 0.0
        %611 = vmatpush1.msra.mxu0 0.0
        %612 = vmatprep.subr.mxu0 0.0
        %613 = vmatpush1.msra.mxu0 0.0
        %614 = vmatprep.subr.mxu0 0.0
        %615 = vmatpush1.msra.mxu0 0.0
        %616 = vmatprep.subr.mxu0 0.0
        %617 = vmatpush1.msra.mxu0 0.0
        %618 = vmatprep.subr.mxu0 0.0
        %619 = vmatpush1.msra.mxu0 0.0
        %620 = vmatprep.subr.mxu0 0.0
        %621 = vmatpush1.msra.mxu0 0.0
        %622 = vmatprep.subr.mxu0 0.0
        %623 = vmatpush1.msra.mxu0 0.0
        %624 = vmatprep.subr.mxu0 0.0
        %625 = vmatpush1.msra.mxu0 0.0
        %626 = vmatprep.subr.mxu0 0.0
        %627 = vmatpush1.msra.mxu0 0.0
        %628 = vmatprep.mubr.f32.mxu0 0.0
        %629 = vmatmul.mubr.f32.gmra.mrb[0].mxu0 %v556
        %v630 = vpop.f32.mrb[0].mxu0
        %v631 = vadd.f32 0.0, %v630
        %v632 = vpop.f32.mrb[0].mxu0
        %v633 = vadd.f32 0.0, %v632
        %634 = vdwg.mxu0
        %635 = vmatprep.subr.mxu0 0.0
        %636 = vmatpush1.msra.mxu0 %v562
        %637 = vmatprep.subr.mxu0 0.0
        %638 = vmatpush1.msra.mxu0 0.0
        %639 = vmatprep.subr.mxu0 0.0
        %640 = vmatpush1.msra.mxu0 0.0
        %641 = vmatprep.subr.mxu0 0.0
        %642 = vmatpush1.msra.mxu0 0.0
        %643 = vmatprep.subr.mxu0 0.0
        %644 = vmatpush1.msra.mxu0 0.0
        %645 = vmatprep.subr.mxu0 0.0
        %646 = vmatpush1.msra.mxu0 0.0
        %647 = vmatprep.subr.mxu0 0.0
        %648 = vmatpush1.msra.mxu0 0.0
        %649 = vmatprep.subr.mxu0 0.0
        %650 = vmatpush1.msra.mxu0 0.0
        %651 = vmatprep.subr.mxu0 0.0
        %652 = vmatpush1.msra.mxu0 0.0
        %653 = vmatprep.subr.mxu0 0.0
        %654 = vmatpush1.msra.mxu0 0.0
        %655 = vmatprep.subr.mxu0 0.0
        %656 = vmatpush1.msra.mxu0 0.0
        %657 = vmatprep.subr.mxu0 0.0
        %658 = vmatpush1.msra.mxu0 0.0
        %659 = vmatprep.subr.mxu0 0.0
        %660 = vmatpush1.msra.mxu0 0.0
        %661 = vmatprep.subr.mxu0 0.0
        %662 = vmatpush1.msra.mxu0 0.0
        %663 = vmatprep.subr.mxu0 0.0
        %664 = vmatpush1.msra.mxu0 0.0
        %665 = vmatprep.subr.mxu0 0.0
        %666 = vmatpush1.msra.mxu0 0.0
        %667 = vmatprep.subr.mxu0 0.0
        %668 = vmatpush1.msra.mxu0 0.0
        %669 = vmatprep.subr.mxu0 0.0
        %670 = vmatpush1.msra.mxu0 0.0
        %671 = vmatprep.subr.mxu0 0.0
        %672 = vmatpush1.msra.mxu0 0.0
        %673 = vmatprep.subr.mxu0 0.0
        %674 = vmatpush1.msra.mxu0 0.0
        %675 = vmatprep.subr.mxu0 0.0
        %676 = vmatpush1.msra.mxu0 0.0
        %677 = vmatprep.subr.mxu0 0.0
        %678 = vmatpush1.msra.mxu0 0.0
        %679 = vmatprep.subr.mxu0 0.0
        %680 = vmatpush1.msra.mxu0 0.0
        %681 = vmatprep.subr.mxu0 0.0
        %682 = vmatpush1.msra.mxu0 0.0
        %683 = vmatprep.subr.mxu0 0.0
        %684 = vmatpush1.msra.mxu0 0.0
        %685 = vmatprep.subr.mxu0 0.0
        %686 = vmatpush1.msra.mxu0 0.0
        %687 = vmatprep.subr.mxu0 0.0
        %688 = vmatpush1.msra.mxu0 0.0
        %689 = vmatprep.subr.mxu0 0.0
        %690 = vmatpush1.msra.mxu0 0.0
        %691 = vmatprep.subr.mxu0 0.0
        %692 = vmatpush1.msra.mxu0 0.0
        %693 = vmatprep.subr.mxu0 0.0
        %694 = vmatpush1.msra.mxu0 0.0
        %695 = vmatprep.subr.mxu0 0.0
        %696 = vmatpush1.msra.mxu0 0.0
        %697 = vmatprep.subr.mxu0 0.0
        %698 = vmatpush1.msra.mxu0 0.0
        %699 = vmatprep.mubr.f32.mxu0 0.0
        %700 = vmatmul.mubr.f32.gmra.mrb[0].mxu0 %v556
        %v701 = vpop.f32.mrb[0].mxu0
        %v702 = vadd.f32 0.0, %v701
        %v703 = vpop.f32.mrb[0].mxu0
        %704 = vdwg.mxu0
        %v705 = vadd.f32 %v470, %v631
        %v706 = vadd.f32 %v472, %v633
        %v707 = vadd.f32 %v541, %v702
        %s708 = scalar_lea.vmem [#allocation5], 12
        %v709 = vld [vmem:[%s708] sm:$0xf]
        %711 = vrot.lane.b32.xlu0 %v211, 61
        %v712 = vpop.permute.xlu0 %711
        %713 = vrot.lane.b32.xlu0 %v216, 61
        %v714 = vpop.permute.xlu0 %713
        %715 = vrot.lane.b32.xlu0 %v217, 61
        %v716 = vpop.permute.xlu0 %715
        %717 = vrot.lane.b32.xlu0 %v215, 61
        %v718 = vpop.permute.xlu0 %717
        %vm719 = vcmask 498688
        %v720 = vsel %vm719, %v712, %v714
        %v721 = vsel %vm719, %v714, %v716
        %v722 = vsel %vm719, %v716, %v718
        %v724 = vsel %vm233, %v709, 0
        %v726 = vsel %vm237, %v720, 0
        %v728 = vsel %vm237, %v721, 0
        %v730 = vsel %vm237, %v722, 0
        %732 = vmatprep.subr.mxu0 %v728
        %733 = vmatpush1.msra.mxu0 %v726
        %734 = vmatprep.subr.mxu0 0.0
        %735 = vmatpush1.msra.mxu0 0.0
        %736 = vmatprep.subr.mxu0 0.0
        %737 = vmatpush1.msra.mxu0 0.0
        %738 = vmatprep.subr.mxu0 0.0
        %739 = vmatpush1.msra.mxu0 0.0
        %740 = vmatprep.subr.mxu0 0.0
        %741 = vmatpush1.msra.mxu0 0.0
        %742 = vmatprep.subr.mxu0 0.0
        %743 = vmatpush1.msra.mxu0 0.0
        %744 = vmatprep.subr.mxu0 0.0
        %745 = vmatpush1.msra.mxu0 0.0
        %746 = vmatprep.subr.mxu0 0.0
        %747 = vmatpush1.msra.mxu0 0.0
        %748 = vmatprep.subr.mxu0 0.0
        %749 = vmatpush1.msra.mxu0 0.0
        %750 = vmatprep.subr.mxu0 0.0
        %751 = vmatpush1.msra.mxu0 0.0
        %752 = vmatprep.subr.mxu0 0.0
        %753 = vmatpush1.msra.mxu0 0.0
        %754 = vmatprep.subr.mxu0 0.0
        %755 = vmatpush1.msra.mxu0 0.0
        %756 = vmatprep.subr.mxu0 0.0
        %757 = vmatpush1.msra.mxu0 0.0
        %758 = vmatprep.subr.mxu0 0.0
        %759 = vmatpush1.msra.mxu0 0.0
        %760 = vmatprep.subr.mxu0 0.0
        %761 = vmatpush1.msra.mxu0 0.0
        %762 = vmatprep.subr.mxu0 0.0
        %763 = vmatpush1.msra.mxu0 0.0
        %764 = vmatprep.subr.mxu0 0.0
        %765 = vmatpush1.msra.mxu0 0.0
        %766 = vmatprep.subr.mxu0 0.0
        %767 = vmatpush1.msra.mxu0 0.0
        %768 = vmatprep.subr.mxu0 0.0
        %769 = vmatpush1.msra.mxu0 0.0
        %770 = vmatprep.subr.mxu0 0.0
        %771 = vmatpush1.msra.mxu0 0.0
        %772 = vmatprep.subr.mxu0 0.0
        %773 = vmatpush1.msra.mxu0 0.0
        %774 = vmatprep.subr.mxu0 0.0
        %775 = vmatpush1.msra.mxu0 0.0
        %776 = vmatprep.subr.mxu0 0.0
        %777 = vmatpush1.msra.mxu0 0.0
        %778 = vmatprep.subr.mxu0 0.0
        %779 = vmatpush1.msra.mxu0 0.0
        %780 = vmatprep.subr.mxu0 0.0
        %781 = vmatpush1.msra.mxu0 0.0
        %782 = vmatprep.subr.mxu0 0.0
        %783 = vmatpush1.msra.mxu0 0.0
        %784 = vmatprep.subr.mxu0 0.0
        %785 = vmatpush1.msra.mxu0 0.0
        %786 = vmatprep.subr.mxu0 0.0
        %787 = vmatpush1.msra.mxu0 0.0
        %788 = vmatprep.subr.mxu0 0.0
        %789 = vmatpush1.msra.mxu0 0.0
        %790 = vmatprep.subr.mxu0 0.0
        %791 = vmatpush1.msra.mxu0 0.0
        %792 = vmatprep.subr.mxu0 0.0
        %793 = vmatpush1.msra.mxu0 0.0
        %794 = vmatprep.subr.mxu0 0.0
        %795 = vmatpush1.msra.mxu0 0.0
        %796 = vmatprep.mubr.f32.mxu0 0.0
        %797 = vmatmul.mubr.f32.gmra.mrb[0].mxu0 %v724
        %v798 = vpop.f32.mrb[0].mxu0
        %v799 = vadd.f32 0.0, %v798
        %v800 = vpop.f32.mrb[0].mxu0
        %v801 = vadd.f32 0.0, %v800
        %802 = vdwg.mxu0
        %803 = vmatprep.subr.mxu0 0.0
        %804 = vmatpush1.msra.mxu0 %v730
        %805 = vmatprep.subr.mxu0 0.0
        %806 = vmatpush1.msra.mxu0 0.0
        %807 = vmatprep.subr.mxu0 0.0
        %808 = vmatpush1.msra.mxu0 0.0
        %809 = vmatprep.subr.mxu0 0.0
        %810 = vmatpush1.msra.mxu0 0.0
        %811 = vmatprep.subr.mxu0 0.0
        %812 = vmatpush1.msra.mxu0 0.0
        %813 = vmatprep.subr.mxu0 0.0
        %814 = vmatpush1.msra.mxu0 0.0
        %815 = vmatprep.subr.mxu0 0.0
        %816 = vmatpush1.msra.mxu0 0.0
        %817 = vmatprep.subr.mxu0 0.0
        %818 = vmatpush1.msra.mxu0 0.0
        %819 = vmatprep.subr.mxu0 0.0
        %820 = vmatpush1.msra.mxu0 0.0
        %821 = vmatprep.subr.mxu0 0.0
        %822 = vmatpush1.msra.mxu0 0.0
        %823 = vmatprep.subr.mxu0 0.0
        %824 = vmatpush1.msra.mxu0 0.0
        %825 = vmatprep.subr.mxu0 0.0
        %826 = vmatpush1.msra.mxu0 0.0
        %827 = vmatprep.subr.mxu0 0.0
        %828 = vmatpush1.msra.mxu0 0.0
        %829 = vmatprep.subr.mxu0 0.0
        %830 = vmatpush1.msra.mxu0 0.0
        %831 = vmatprep.subr.mxu0 0.0
        %832 = vmatpush1.msra.mxu0 0.0
        %833 = vmatprep.subr.mxu0 0.0
        %834 = vmatpush1.msra.mxu0 0.0
        %835 = vmatprep.subr.mxu0 0.0
        %836 = vmatpush1.msra.mxu0 0.0
        %837 = vmatprep.subr.mxu0 0.0
        %838 = vmatpush1.msra.mxu0 0.0
        %839 = vmatprep.subr.mxu0 0.0
        %840 = vmatpush1.msra.mxu0 0.0
        %841 = vmatprep.subr.mxu0 0.0
        %842 = vmatpush1.msra.mxu0 0.0
        %843 = vmatprep.subr.mxu0 0.0
        %844 = vmatpush1.msra.mxu0 0.0
        %845 = vmatprep.subr.mxu0 0.0
        %846 = vmatpush1.msra.mxu0 0.0
        %847 = vmatprep.subr.mxu0 0.0
        %848 = vmatpush1.msra.mxu0 0.0
        %849 = vmatprep.subr.mxu0 0.0
        %850 = vmatpush1.msra.mxu0 0.0
        %851 = vmatprep.subr.mxu0 0.0
        %852 = vmatpush1.msra.mxu0 0.0
        %853 = vmatprep.subr.mxu0 0.0
        %854 = vmatpush1.msra.mxu0 0.0
        %855 = vmatprep.subr.mxu0 0.0
        %856 = vmatpush1.msra.mxu0 0.0
        %857 = vmatprep.subr.mxu0 0.0
        %858 = vmatpush1.msra.mxu0 0.0
        %859 = vmatprep.subr.mxu0 0.0
        %860 = vmatpush1.msra.mxu0 0.0
        %861 = vmatprep.subr.mxu0 0.0
        %862 = vmatpush1.msra.mxu0 0.0
        %863 = vmatprep.subr.mxu0 0.0
        %864 = vmatpush1.msra.mxu0 0.0
        %865 = vmatprep.subr.mxu0 0.0
        %866 = vmatpush1.msra.mxu0 0.0
        %867 = vmatprep.mubr.f32.mxu0 0.0
        %868 = vmatmul.mubr.f32.gmra.mrb[0].mxu0 %v724
        %v869 = vpop.f32.mrb[0].mxu0
        %v870 = vadd.f32 0.0, %v869
        %v871 = vpop.f32.mrb[0].mxu0
        %872 = vdwg.mxu0
        %v873 = vadd.f32 %v705, %v799
        %v874 = vadd.f32 %v706, %v801
        %v875 = vadd.f32 %v707, %v870
        %s876 = scalar_lea.vmem [#allocation5], 16
        %v877 = vld [vmem:[%s876] sm:$0xf]
        %v879 = vsel %vm233, %v877, 0
        %v881 = vsel %vm237, %v202, 0
        %v883 = vsel %vm237, %v206, 0
        %v885 = vsel %vm237, %v203, 0
        %887 = vmatprep.subr.mxu0 %v883
        %888 = vmatpush1.msra.mxu0 %v881
        %889 = vmatprep.subr.mxu0 0.0
        %890 = vmatpush1.msra.mxu0 0.0
        %891 = vmatprep.subr.mxu0 0.0
        %892 = vmatpush1.msra.mxu0 0.0
        %893 = vmatprep.subr.mxu0 0.0
        %894 = vmatpush1.msra.mxu0 0.0
        %895 = vmatprep.subr.mxu0 0.0
        %896 = vmatpush1.msra.mxu0 0.0
        %897 = vmatprep.subr.mxu0 0.0
        %898 = vmatpush1.msra.mxu0 0.0
        %899 = vmatprep.subr.mxu0 0.0
        %900 = vmatpush1.msra.mxu0 0.0
        %901 = vmatprep.subr.mxu0 0.0
        %902 = vmatpush1.msra.mxu0 0.0
        %903 = vmatprep.subr.mxu0 0.0
        %904 = vmatpush1.msra.mxu0 0.0
        %905 = vmatprep.subr.mxu0 0.0
        %906 = vmatpush1.msra.mxu0 0.0
        %907 = vmatprep.subr.mxu0 0.0
        %908 = vmatpush1.msra.mxu0 0.0
        %909 = vmatprep.subr.mxu0 0.0
        %910 = vmatpush1.msra.mxu0 0.0
        %911 = vmatprep.subr.mxu0 0.0
        %912 = vmatpush1.msra.mxu0 0.0
        %913 = vmatprep.subr.mxu0 0.0
        %914 = vmatpush1.msra.mxu0 0.0
        %915 = vmatprep.subr.mxu0 0.0
        %916 = vmatpush1.msra.mxu0 0.0
        %917 = vmatprep.subr.mxu0 0.0
        %918 = vmatpush1.msra.mxu0 0.0
        %919 = vmatprep.subr.mxu0 0.0
        %920 = vmatpush1.msra.mxu0 0.0
        %921 = vmatprep.subr.mxu0 0.0
        %922 = vmatpush1.msra.mxu0 0.0
        %923 = vmatprep.subr.mxu0 0.0
        %924 = vmatpush1.msra.mxu0 0.0
        %925 = vmatprep.subr.mxu0 0.0
        %926 = vmatpush1.msra.mxu0 0.0
        %927 = vmatprep.subr.mxu0 0.0
        %928 = vmatpush1.msra.mxu0 0.0
        %929 = vmatprep.subr.mxu0 0.0
        %930 = vmatpush1.msra.mxu0 0.0
        %931 = vmatprep.subr.mxu0 0.0
        %932 = vmatpush1.msra.mxu0 0.0
        %933 = vmatprep.subr.mxu0 0.0
        %934 = vmatpush1.msra.mxu0 0.0
        %935 = vmatprep.subr.mxu0 0.0
        %936 = vmatpush1.msra.mxu0 0.0
        %937 = vmatprep.subr.mxu0 0.0
        %938 = vmatpush1.msra.mxu0 0.0
        %939 = vmatprep.subr.mxu0 0.0
        %940 = vmatpush1.msra.mxu0 0.0
        %941 = vmatprep.subr.mxu0 0.0
        %942 = vmatpush1.msra.mxu0 0.0
        %943 = vmatprep.subr.mxu0 0.0
        %944 = vmatpush1.msra.mxu0 0.0
        %945 = vmatprep.subr.mxu0 0.0
        %946 = vmatpush1.msra.mxu0 0.0
        %947 = vmatprep.subr.mxu0 0.0
        %948 = vmatpush1.msra.mxu0 0.0
        %949 = vmatprep.subr.mxu0 0.0
        %950 = vmatpush1.msra.mxu0 0.0
        %951 = vmatprep.mubr.f32.mxu0 0.0
        %952 = vmatmul.mubr.f32.gmra.mrb[0].mxu0 %v879
        %v953 = vpop.f32.mrb[0].mxu0
        %v954 = vadd.f32 0.0, %v953
        %v955 = vpop.f32.mrb[0].mxu0
        %v956 = vadd.f32 0.0, %v955
        %957 = vdwg.mxu0
        %958 = vmatprep.subr.mxu0 0.0
        %959 = vmatpush1.msra.mxu0 %v885
        %960 = vmatprep.subr.mxu0 0.0
        %961 = vmatpush1.msra.mxu0 0.0
        %962 = vmatprep.subr.mxu0 0.0
        %963 = vmatpush1.msra.mxu0 0.0
        %964 = vmatprep.subr.mxu0 0.0
        %965 = vmatpush1.msra.mxu0 0.0
        %966 = vmatprep.subr.mxu0 0.0
        %967 = vmatpush1.msra.mxu0 0.0
        %968 = vmatprep.subr.mxu0 0.0
        %969 = vmatpush1.msra.mxu0 0.0
        %970 = vmatprep.subr.mxu0 0.0
        %971 = vmatpush1.msra.mxu0 0.0
        %972 = vmatprep.subr.mxu0 0.0
        %973 = vmatpush1.msra.mxu0 0.0
        %974 = vmatprep.subr.mxu0 0.0
        %975 = vmatpush1.msra.mxu0 0.0
        %976 = vmatprep.subr.mxu0 0.0
        %977 = vmatpush1.msra.mxu0 0.0
        %978 = vmatprep.subr.mxu0 0.0
        %979 = vmatpush1.msra.mxu0 0.0
        %980 = vmatprep.subr.mxu0 0.0
        %981 = vmatpush1.msra.mxu0 0.0
        %982 = vmatprep.subr.mxu0 0.0
        %983 = vmatpush1.msra.mxu0 0.0
        %984 = vmatprep.subr.mxu0 0.0
        %985 = vmatpush1.msra.mxu0 0.0
        %986 = vmatprep.subr.mxu0 0.0
        %987 = vmatpush1.msra.mxu0 0.0
        %988 = vmatprep.subr.mxu0 0.0
        %989 = vmatpush1.msra.mxu0 0.0
        %990 = vmatprep.subr.mxu0 0.0
        %991 = vmatpush1.msra.mxu0 0.0
        %992 = vmatprep.subr.mxu0 0.0
        %993 = vmatpush1.msra.mxu0 0.0
        %994 = vmatprep.subr.mxu0 0.0
        %995 = vmatpush1.msra.mxu0 0.0
        %996 = vmatprep.subr.mxu0 0.0
        %997 = vmatpush1.msra.mxu0 0.0
        %998 = vmatprep.subr.mxu0 0.0
        %999 = vmatpush1.msra.mxu0 0.0
        %1000 = vmatprep.subr.mxu0 0.0
        %1001 = vmatpush1.msra.mxu0 0.0
        %1002 = vmatprep.subr.mxu0 0.0
        %1003 = vmatpush1.msra.mxu0 0.0
        %1004 = vmatprep.subr.mxu0 0.0
        %1005 = vmatpush1.msra.mxu0 0.0
        %1006 = vmatprep.subr.mxu0 0.0
        %1007 = vmatpush1.msra.mxu0 0.0
        %1008 = vmatprep.subr.mxu0 0.0
        %1009 = vmatpush1.msra.mxu0 0.0
        %1010 = vmatprep.subr.mxu0 0.0
        %1011 = vmatpush1.msra.mxu0 0.0
        %1012 = vmatprep.subr.mxu0 0.0
        %1013 = vmatpush1.msra.mxu0 0.0
        %1014 = vmatprep.subr.mxu0 0.0
        %1015 = vmatpush1.msra.mxu0 0.0
        %1016 = vmatprep.subr.mxu0 0.0
        %1017 = vmatpush1.msra.mxu0 0.0
        %1018 = vmatprep.subr.mxu0 0.0
        %1019 = vmatpush1.msra.mxu0 0.0
        %1020 = vmatprep.subr.mxu0 0.0
        %1021 = vmatpush1.msra.mxu0 0.0
        %1022 = vmatprep.mubr.f32.mxu0 0.0
        %1023 = vmatmul.mubr.f32.gmra.mrb[0].mxu0 %v879
        %v1024 = vpop.f32.mrb[0].mxu0
        %v1025 = vadd.f32 0.0, %v1024
        %v1026 = vpop.f32.mrb[0].mxu0
        %1027 = vdwg.mxu0
        %v1028 = vadd.f32 %v873, %v954
        %v1029 = vadd.f32 %v874, %v956
        %v1030 = vadd.f32 %v875, %v1025
        %s1031 = scalar_lea.vmem [#allocation5], 20
        %v1032 = vld [vmem:[%s1031] sm:$0xf]
        %1033 = vrot.lane.b32.xlu0 %v202, 127
        %v1034 = vpop.permute.xlu0 %1033
        %1035 = vrot.lane.b32.xlu0 %v206, 127
        %v1036 = vpop.permute.xlu0 %1035
        %1037 = vrot.lane.b32.xlu0 %v211, 127
        %v1038 = vpop.permute.xlu0 %1037
        %vm1039 = vcmask 1039360
        %v1040 = vsel %vm1039, %v1034, %v1036
        %v1041 = vsel %vm1039, %v1036, %v1038
        %v1043 = vsel %vm233, %v1032, 0
        %v1045 = vsel %vm237, %v1040, 0
        %v1047 = vsel %vm237, %v1041, 0
        %v1049 = vsel %vm237, %v1038, 0
        %1051 = vmatprep.subr.mxu0 %v1047
        %1052 = vmatpush1.msra.mxu0 %v1045
        %1053 = vmatprep.subr.mxu0 0.0
        %1054 = vmatpush1.msra.mxu0 0.0
        %1055 = vmatprep.subr.mxu0 0.0
        %1056 = vmatpush1.msra.mxu0 0.0
        %1057 = vmatprep.subr.mxu0 0.0
        %1058 = vmatpush1.msra.mxu0 0.0
        %1059 = vmatprep.subr.mxu0 0.0
        %1060 = vmatpush1.msra.mxu0 0.0
        %1061 = vmatprep.subr.mxu0 0.0
        %1062 = vmatpush1.msra.mxu0 0.0
        %1063 = vmatprep.subr.mxu0 0.0
        %1064 = vmatpush1.msra.mxu0 0.0
        %1065 = vmatprep.subr.mxu0 0.0
        %1066 = vmatpush1.msra.mxu0 0.0
        %1067 = vmatprep.subr.mxu0 0.0
        %1068 = vmatpush1.msra.mxu0 0.0
        %1069 = vmatprep.subr.mxu0 0.0
        %1070 = vmatpush1.msra.mxu0 0.0
        %1071 = vmatprep.subr.mxu0 0.0
        %1072 = vmatpush1.msra.mxu0 0.0
        %1073 = vmatprep.subr.mxu0 0.0
        %1074 = vmatpush1.msra.mxu0 0.0
        %1075 = vmatprep.subr.mxu0 0.0
        %1076 = vmatpush1.msra.mxu0 0.0
        %1077 = vmatprep.subr.mxu0 0.0
        %1078 = vmatpush1.msra.mxu0 0.0
        %1079 = vmatprep.subr.mxu0 0.0
        %1080 = vmatpush1.msra.mxu0 0.0
        %1081 = vmatprep.subr.mxu0 0.0
        %1082 = vmatpush1.msra.mxu0 0.0
        %1083 = vmatprep.subr.mxu0 0.0
        %1084 = vmatpush1.msra.mxu0 0.0
        %1085 = vmatprep.subr.mxu0 0.0
        %1086 = vmatpush1.msra.mxu0 0.0
        %1087 = vmatprep.subr.mxu0 0.0
        %1088 = vmatpush1.msra.mxu0 0.0
        %1089 = vmatprep.subr.mxu0 0.0
        %1090 = vmatpush1.msra.mxu0 0.0
        %1091 = vmatprep.subr.mxu0 0.0
        %1092 = vmatpush1.msra.mxu0 0.0
        %1093 = vmatprep.subr.mxu0 0.0
        %1094 = vmatpush1.msra.mxu0 0.0
        %1095 = vmatprep.subr.mxu0 0.0
        %1096 = vmatpush1.msra.mxu0 0.0
        %1097 = vmatprep.subr.mxu0 0.0
        %1098 = vmatpush1.msra.mxu0 0.0
        %1099 = vmatprep.subr.mxu0 0.0
        %1100 = vmatpush1.msra.mxu0 0.0
        %1101 = vmatprep.subr.mxu0 0.0
        %1102 = vmatpush1.msra.mxu0 0.0
        %1103 = vmatprep.subr.mxu0 0.0
        %1104 = vmatpush1.msra.mxu0 0.0
        %1105 = vmatprep.subr.mxu0 0.0
        %1106 = vmatpush1.msra.mxu0 0.0
        %1107 = vmatprep.subr.mxu0 0.0
        %1108 = vmatpush1.msra.mxu0 0.0
        %1109 = vmatprep.subr.mxu0 0.0
        %1110 = vmatpush1.msra.mxu0 0.0
        %1111 = vmatprep.subr.mxu0 0.0
        %1112 = vmatpush1.msra.mxu0 0.0
        %1113 = vmatprep.subr.mxu0 0.0
        %1114 = vmatpush1.msra.mxu0 0.0
        %1115 = vmatprep.mubr.f32.mxu0 0.0
        %1116 = vmatmul.mubr.f32.gmra.mrb[0].mxu0 %v1043
        %v1117 = vpop.f32.mrb[0].mxu0
        %v1118 = vadd.f32 0.0, %v1117
        %v1119 = vpop.f32.mrb[0].mxu0
        %v1120 = vadd.f32 0.0, %v1119
        %1121 = vdwg.mxu0
        %1122 = vmatprep.subr.mxu0 0.0
        %1123 = vmatpush1.msra.mxu0 %v1049
        %1124 = vmatprep.subr.mxu0 0.0
        %1125 = vmatpush1.msra.mxu0 0.0
        %1126 = vmatprep.subr.mxu0 0.0
        %1127 = vmatpush1.msra.mxu0 0.0
        %1128 = vmatprep.subr.mxu0 0.0
        %1129 = vmatpush1.msra.mxu0 0.0
        %1130 = vmatprep.subr.mxu0 0.0
        %1131 = vmatpush1.msra.mxu0 0.0
        %1132 = vmatprep.subr.mxu0 0.0
        %1133 = vmatpush1.msra.mxu0 0.0
        %1134 = vmatprep.subr.mxu0 0.0
        %1135 = vmatpush1.msra.mxu0 0.0
        %1136 = vmatprep.subr.mxu0 0.0
        %1137 = vmatpush1.msra.mxu0 0.0
        %1138 = vmatprep.subr.mxu0 0.0
        %1139 = vmatpush1.msra.mxu0 0.0
        %1140 = vmatprep.subr.mxu0 0.0
        %1141 = vmatpush1.msra.mxu0 0.0
        %1142 = vmatprep.subr.mxu0 0.0
        %1143 = vmatpush1.msra.mxu0 0.0
        %1144 = vmatprep.subr.mxu0 0.0
        %1145 = vmatpush1.msra.mxu0 0.0
        %1146 = vmatprep.subr.mxu0 0.0
        %1147 = vmatpush1.msra.mxu0 0.0
        %1148 = vmatprep.subr.mxu0 0.0
        %1149 = vmatpush1.msra.mxu0 0.0
        %1150 = vmatprep.subr.mxu0 0.0
        %1151 = vmatpush1.msra.mxu0 0.0
        %1152 = vmatprep.subr.mxu0 0.0
        %1153 = vmatpush1.msra.mxu0 0.0
        %1154 = vmatprep.subr.mxu0 0.0
        %1155 = vmatpush1.msra.mxu0 0.0
        %1156 = vmatprep.subr.mxu0 0.0
        %1157 = vmatpush1.msra.mxu0 0.0
        %1158 = vmatprep.subr.mxu0 0.0
        %1159 = vmatpush1.msra.mxu0 0.0
        %1160 = vmatprep.subr.mxu0 0.0
        %1161 = vmatpush1.msra.mxu0 0.0
        %1162 = vmatprep.subr.mxu0 0.0
        %1163 = vmatpush1.msra.mxu0 0.0
        %1164 = vmatprep.subr.mxu0 0.0
        %1165 = vmatpush1.msra.mxu0 0.0
        %1166 = vmatprep.subr.mxu0 0.0
        %1167 = vmatpush1.msra.mxu0 0.0
        %1168 = vmatprep.subr.mxu0 0.0
        %1169 = vmatpush1.msra.mxu0 0.0
        %1170 = vmatprep.subr.mxu0 0.0
        %1171 = vmatpush1.msra.mxu0 0.0
        %1172 = vmatprep.subr.mxu0 0.0
        %1173 = vmatpush1.msra.mxu0 0.0
        %1174 = vmatprep.subr.mxu0 0.0
        %1175 = vmatpush1.msra.mxu0 0.0
        %1176 = vmatprep.subr.mxu0 0.0
        %1177 = vmatpush1.msra.mxu0 0.0
        %1178 = vmatprep.subr.mxu0 0.0
        %1179 = vmatpush1.msra.mxu0 0.0
        %1180 = vmatprep.subr.mxu0 0.0
        %1181 = vmatpush1.msra.mxu0 0.0
        %1182 = vmatprep.subr.mxu0 0.0
        %1183 = vmatpush1.msra.mxu0 0.0
        %1184 = vmatprep.subr.mxu0 0.0
        %1185 = vmatpush1.msra.mxu0 0.0
        %1186 = vmatprep.mubr.f32.mxu0 0.0
        %1187 = vmatmul.mubr.f32.gmra.mrb[0].mxu0 %v1043
        %v1188 = vpop.f32.mrb[0].mxu0
        %v1189 = vadd.f32 0.0, %v1188
        %v1190 = vpop.f32.mrb[0].mxu0
        %1191 = vdwg.mxu0
        %v1192 = vadd.f32 %v1028, %v1118
        %v1193 = vadd.f32 %v1029, %v1120
        %v1194 = vadd.f32 %v1030, %v1189
        %s1195 = scalar_lea.vmem [#allocation5], 24
        %v1196 = vld [vmem:[%s1195] sm:$0xf]
        %1197 = vrot.lane.b32.xlu0 %v202, 111
        %v1198 = vpop.permute.xlu0 %1197
        %1199 = vrot.lane.b32.xlu0 %v206, 111
        %v1200 = vpop.permute.xlu0 %1199
        %1201 = vrot.lane.b32.xlu0 %v211, 111
        %v1202 = vpop.permute.xlu0 %1201
        %vm1203 = vcmask 908288
        %v1204 = vsel %vm1203, %v1198, %v1200
        %v1205 = vsel %vm1203, %v1200, %v1202
        %v1207 = vsel %vm233, %v1196, 0
        %v1209 = vsel %vm237, %v1204, 0
        %v1211 = vsel %vm237, %v1205, 0
        %v1213 = vsel %vm237, %v1202, 0
        %1215 = vmatprep.subr.mxu0 %v1211
        %1216 = vmatpush1.msra.mxu0 %v1209
        %1217 = vmatprep.subr.mxu0 0.0
        %1218 = vmatpush1.msra.mxu0 0.0
        %1219 = vmatprep.subr.mxu0 0.0
        %1220 = vmatpush1.msra.mxu0 0.0
        %1221 = vmatprep.subr.mxu0 0.0
        %1222 = vmatpush1.msra.mxu0 0.0
        %1223 = vmatprep.subr.mxu0 0.0
        %1224 = vmatpush1.msra.mxu0 0.0
        %1225 = vmatprep.subr.mxu0 0.0
        %1226 = vmatpush1.msra.mxu0 0.0
        %1227 = vmatprep.subr.mxu0 0.0
        %1228 = vmatpush1.msra.mxu0 0.0
        %1229 = vmatprep.subr.mxu0 0.0
        %1230 = vmatpush1.msra.mxu0 0.0
        %1231 = vmatprep.subr.mxu0 0.0
        %1232 = vmatpush1.msra.mxu0 0.0
        %1233 = vmatprep.subr.mxu0 0.0
        %1234 = vmatpush1.msra.mxu0 0.0
        %1235 = vmatprep.subr.mxu0 0.0
        %1236 = vmatpush1.msra.mxu0 0.0
        %1237 = vmatprep.subr.mxu0 0.0
        %1238 = vmatpush1.msra.mxu0 0.0
        %1239 = vmatprep.subr.mxu0 0.0
        %1240 = vmatpush1.msra.mxu0 0.0
        %1241 = vmatprep.subr.mxu0 0.0
        %1242 = vmatpush1.msra.mxu0 0.0
        %1243 = vmatprep.subr.mxu0 0.0
        %1244 = vmatpush1.msra.mxu0 0.0
        %1245 = vmatprep.subr.mxu0 0.0
        %1246 = vmatpush1.msra.mxu0 0.0
        %1247 = vmatprep.subr.mxu0 0.0
        %1248 = vmatpush1.msra.mxu0 0.0
        %1249 = vmatprep.subr.mxu0 0.0
        %1250 = vmatpush1.msra.mxu0 0.0
        %1251 = vmatprep.subr.mxu0 0.0
        %1252 = vmatpush1.msra.mxu0 0.0
        %1253 = vmatprep.subr.mxu0 0.0
        %1254 = vmatpush1.msra.mxu0 0.0
        %1255 = vmatprep.subr.mxu0 0.0
        %1256 = vmatpush1.msra.mxu0 0.0
        %1257 = vmatprep.subr.mxu0 0.0
        %1258 = vmatpush1.msra.mxu0 0.0
        %1259 = vmatprep.subr.mxu0 0.0
        %1260 = vmatpush1.msra.mxu0 0.0
        %1261 = vmatprep.subr.mxu0 0.0
        %1262 = vmatpush1.msra.mxu0 0.0
        %1263 = vmatprep.subr.mxu0 0.0
        %1264 = vmatpush1.msra.mxu0 0.0
        %1265 = vmatprep.subr.mxu0 0.0
        %1266 = vmatpush1.msra.mxu0 0.0
        %1267 = vmatprep.subr.mxu0 0.0
        %1268 = vmatpush1.msra.mxu0 0.0
        %1269 = vmatprep.subr.mxu0 0.0
        %1270 = vmatpush1.msra.mxu0 0.0
        %1271 = vmatprep.subr.mxu0 0.0
        %1272 = vmatpush1.msra.mxu0 0.0
        %1273 = vmatprep.subr.mxu0 0.0
        %1274 = vmatpush1.msra.mxu0 0.0
        %1275 = vmatprep.subr.mxu0 0.0
        %1276 = vmatpush1.msra.mxu0 0.0
        %1277 = vmatprep.subr.mxu0 0.0
        %1278 = vmatpush1.msra.mxu0 0.0
        %1279 = vmatprep.mubr.f32.mxu0 0.0
        %1280 = vmatmul.mubr.f32.gmra.mrb[0].mxu0 %v1207
        %v1281 = vpop.f32.mrb[0].mxu0
        %v1282 = vadd.f32 0.0, %v1281
        %v1283 = vpop.f32.mrb[0].mxu0
        %v1284 = vadd.f32 0.0, %v1283
        %1285 = vdwg.mxu0
        %1286 = vmatprep.subr.mxu0 0.0
        %1287 = vmatpush1.msra.mxu0 %v1213
        %1288 = vmatprep.subr.mxu0 0.0
        %1289 = vmatpush1.msra.mxu0 0.0
        %1290 = vmatprep.subr.mxu0 0.0
        %1291 = vmatpush1.msra.mxu0 0.0
        %1292 = vmatprep.subr.mxu0 0.0
        %1293 = vmatpush1.msra.mxu0 0.0
        %1294 = vmatprep.subr.mxu0 0.0
        %1295 = vmatpush1.msra.mxu0 0.0
        %1296 = vmatprep.subr.mxu0 0.0
        %1297 = vmatpush1.msra.mxu0 0.0
        %1298 = vmatprep.subr.mxu0 0.0
        %1299 = vmatpush1.msra.mxu0 0.0
        %1300 = vmatprep.subr.mxu0 0.0
        %1301 = vmatpush1.msra.mxu0 0.0
        %1302 = vmatprep.subr.mxu0 0.0
        %1303 = vmatpush1.msra.mxu0 0.0
        %1304 = vmatprep.subr.mxu0 0.0
        %1305 = vmatpush1.msra.mxu0 0.0
        %1306 = vmatprep.subr.mxu0 0.0
        %1307 = vmatpush1.msra.mxu0 0.0
        %1308 = vmatprep.subr.mxu0 0.0
        %1309 = vmatpush1.msra.mxu0 0.0
        %1310 = vmatprep.subr.mxu0 0.0
        %1311 = vmatpush1.msra.mxu0 0.0
        %1312 = vmatprep.subr.mxu0 0.0
        %1313 = vmatpush1.msra.mxu0 0.0
        %1314 = vmatprep.subr.mxu0 0.0
        %1315 = vmatpush1.msra.mxu0 0.0
        %1316 = vmatprep.subr.mxu0 0.0
        %1317 = vmatpush1.msra.mxu0 0.0
        %1318 = vmatprep.subr.mxu0 0.0
        %1319 = vmatpush1.msra.mxu0 0.0
        %1320 = vmatprep.subr.mxu0 0.0
        %1321 = vmatpush1.msra.mxu0 0.0
        %1322 = vmatprep.subr.mxu0 0.0
        %1323 = vmatpush1.msra.mxu0 0.0
        %1324 = vmatprep.subr.mxu0 0.0
        %1325 = vmatpush1.msra.mxu0 0.0
        %1326 = vmatprep.subr.mxu0 0.0
        %1327 = vmatpush1.msra.mxu0 0.0
        %1328 = vmatprep.subr.mxu0 0.0
        %1329 = vmatpush1.msra.mxu0 0.0
        %1330 = vmatprep.subr.mxu0 0.0
        %1331 = vmatpush1.msra.mxu0 0.0
        %1332 = vmatprep.subr.mxu0 0.0
        %1333 = vmatpush1.msra.mxu0 0.0
        %1334 = vmatprep.subr.mxu0 0.0
        %1335 = vmatpush1.msra.mxu0 0.0
        %1336 = vmatprep.subr.mxu0 0.0
        %1337 = vmatpush1.msra.mxu0 0.0
        %1338 = vmatprep.subr.mxu0 0.0
        %1339 = vmatpush1.msra.mxu0 0.0
        %1340 = vmatprep.subr.mxu0 0.0
        %1341 = vmatpush1.msra.mxu0 0.0
        %1342 = vmatprep.subr.mxu0 0.0
        %1343 = vmatpush1.msra.mxu0 0.0
        %1344 = vmatprep.subr.mxu0 0.0
        %1345 = vmatpush1.msra.mxu0 0.0
        %1346 = vmatprep.subr.mxu0 0.0
        %1347 = vmatpush1.msra.mxu0 0.0
        %1348 = vmatprep.subr.mxu0 0.0
        %1349 = vmatpush1.msra.mxu0 0.0
        %1350 = vmatprep.mubr.f32.mxu0 0.0
        %1351 = vmatmul.mubr.f32.gmra.mrb[0].mxu0 %v1207
        %v1352 = vpop.f32.mrb[0].mxu0
        %v1353 = vadd.f32 0.0, %v1352
        %v1354 = vpop.f32.mrb[0].mxu0
        %1355 = vdwg.mxu0
        %v1356 = vadd.f32 %v1192, %v1282
        %v1357 = vadd.f32 %v1193, %v1284
        %v1358 = vadd.f32 %v1194, %v1353
        %s1359 = scalar_lea.vmem [#allocation5], 28
        %v1360 = vld [vmem:[%s1359] sm:$0xf]
        %1361 = vrot.lane.b32.xlu0 %v202, 110
        %v1362 = vpop.permute.xlu0 %1361
        %1363 = vrot.lane.b32.xlu0 %v206, 110
        %v1364 = vpop.permute.xlu0 %1363
        %1365 = vrot.lane.b32.xlu0 %v211, 110
        %v1366 = vpop.permute.xlu0 %1365
        %vm1367 = vcmask 900096
        %v1368 = vsel %vm1367, %v1362, %v1364
        %v1369 = vsel %vm1367, %v1364, %v1366
        %v1371 = vsel %vm233, %v1360, 0
        %v1373 = vsel %vm237, %v1368, 0
        %v1375 = vsel %vm237, %v1369, 0
        %v1377 = vsel %vm237, %v1366, 0
        %1379 = vmatprep.subr.mxu0 %v1375
        %1380 = vmatpush1.msra.mxu0 %v1373
        %1381 = vmatprep.subr.mxu0 0.0
        %1382 = vmatpush1.msra.mxu0 0.0
        %1383 = vmatprep.subr.mxu0 0.0
        %1384 = vmatpush1.msra.mxu0 0.0
        %1385 = vmatprep.subr.mxu0 0.0
        %1386 = vmatpush1.msra.mxu0 0.0
        %1387 = vmatprep.subr.mxu0 0.0
        %1388 = vmatpush1.msra.mxu0 0.0
        %1389 = vmatprep.subr.mxu0 0.0
        %1390 = vmatpush1.msra.mxu0 0.0
        %1391 = vmatprep.subr.mxu0 0.0
        %1392 = vmatpush1.msra.mxu0 0.0
        %1393 = vmatprep.subr.mxu0 0.0
        %1394 = vmatpush1.msra.mxu0 0.0
        %1395 = vmatprep.subr.mxu0 0.0
        %1396 = vmatpush1.msra.mxu0 0.0
        %1397 = vmatprep.subr.mxu0 0.0
        %1398 = vmatpush1.msra.mxu0 0.0
        %1399 = vmatprep.subr.mxu0 0.0
        %1400 = vmatpush1.msra.mxu0 0.0
        %1401 = vmatprep.subr.mxu0 0.0
        %1402 = vmatpush1.msra.mxu0 0.0
        %1403 = vmatprep.subr.mxu0 0.0
        %1404 = vmatpush1.msra.mxu0 0.0
        %1405 = vmatprep.subr.mxu0 0.0
        %1406 = vmatpush1.msra.mxu0 0.0
        %1407 = vmatprep.subr.mxu0 0.0
        %1408 = vmatpush1.msra.mxu0 0.0
        %1409 = vmatprep.subr.mxu0 0.0
        %1410 = vmatpush1.msra.mxu0 0.0
        %1411 = vmatprep.subr.mxu0 0.0
        %1412 = vmatpush1.msra.mxu0 0.0
        %1413 = vmatprep.subr.mxu0 0.0
        %1414 = vmatpush1.msra.mxu0 0.0
        %1415 = vmatprep.subr.mxu0 0.0
        %1416 = vmatpush1.msra.mxu0 0.0
        %1417 = vmatprep.subr.mxu0 0.0
        %1418 = vmatpush1.msra.mxu0 0.0
        %1419 = vmatprep.subr.mxu0 0.0
        %1420 = vmatpush1.msra.mxu0 0.0
        %1421 = vmatprep.subr.mxu0 0.0
        %1422 = vmatpush1.msra.mxu0 0.0
        %1423 = vmatprep.subr.mxu0 0.0
        %1424 = vmatpush1.msra.mxu0 0.0
        %1425 = vmatprep.subr.mxu0 0.0
        %1426 = vmatpush1.msra.mxu0 0.0
        %1427 = vmatprep.subr.mxu0 0.0
        %1428 = vmatpush1.msra.mxu0 0.0
        %1429 = vmatprep.subr.mxu0 0.0
        %1430 = vmatpush1.msra.mxu0 0.0
        %1431 = vmatprep.subr.mxu0 0.0
        %1432 = vmatpush1.msra.mxu0 0.0
        %1433 = vmatprep.subr.mxu0 0.0
        %1434 = vmatpush1.msra.mxu0 0.0
        %1435 = vmatprep.subr.mxu0 0.0
        %1436 = vmatpush1.msra.mxu0 0.0
        %1437 = vmatprep.subr.mxu0 0.0
        %1438 = vmatpush1.msra.mxu0 0.0
        %1439 = vmatprep.subr.mxu0 0.0
        %1440 = vmatpush1.msra.mxu0 0.0
        %1441 = vmatprep.subr.mxu0 0.0
        %1442 = vmatpush1.msra.mxu0 0.0
        %1443 = vmatprep.mubr.f32.mxu0 0.0
        %1444 = vmatmul.mubr.f32.gmra.mrb[0].mxu0 %v1371
        %v1445 = vpop.f32.mrb[0].mxu0
        %v1446 = vadd.f32 0.0, %v1445
        %v1447 = vpop.f32.mrb[0].mxu0
        %v1448 = vadd.f32 0.0, %v1447
        %1449 = vdwg.mxu0
        %1450 = vmatprep.subr.mxu0 0.0
        %1451 = vmatpush1.msra.mxu0 %v1377
        %1452 = vmatprep.subr.mxu0 0.0
        %1453 = vmatpush1.msra.mxu0 0.0
        %1454 = vmatprep.subr.mxu0 0.0
        %1455 = vmatpush1.msra.mxu0 0.0
        %1456 = vmatprep.subr.mxu0 0.0
        %1457 = vmatpush1.msra.mxu0 0.0
        %1458 = vmatprep.subr.mxu0 0.0
        %1459 = vmatpush1.msra.mxu0 0.0
        %1460 = vmatprep.subr.mxu0 0.0
        %1461 = vmatpush1.msra.mxu0 0.0
        %1462 = vmatprep.subr.mxu0 0.0
        %1463 = vmatpush1.msra.mxu0 0.0
        %1464 = vmatprep.subr.mxu0 0.0
        %1465 = vmatpush1.msra.mxu0 0.0
        %1466 = vmatprep.subr.mxu0 0.0
        %1467 = vmatpush1.msra.mxu0 0.0
        %1468 = vmatprep.subr.mxu0 0.0
        %1469 = vmatpush1.msra.mxu0 0.0
        %1470 = vmatprep.subr.mxu0 0.0
        %1471 = vmatpush1.msra.mxu0 0.0
        %1472 = vmatprep.subr.mxu0 0.0
        %1473 = vmatpush1.msra.mxu0 0.0
        %1474 = vmatprep.subr.mxu0 0.0
        %1475 = vmatpush1.msra.mxu0 0.0
        %1476 = vmatprep.subr.mxu0 0.0
        %1477 = vmatpush1.msra.mxu0 0.0
        %1478 = vmatprep.subr.mxu0 0.0
        %1479 = vmatpush1.msra.mxu0 0.0
        %1480 = vmatprep.subr.mxu0 0.0
        %1481 = vmatpush1.msra.mxu0 0.0
        %1482 = vmatprep.subr.mxu0 0.0
        %1483 = vmatpush1.msra.mxu0 0.0
        %1484 = vmatprep.subr.mxu0 0.0
        %1485 = vmatpush1.msra.mxu0 0.0
        %1486 = vmatprep.subr.mxu0 0.0
        %1487 = vmatpush1.msra.mxu0 0.0
        %1488 = vmatprep.subr.mxu0 0.0
        %1489 = vmatpush1.msra.mxu0 0.0
        %1490 = vmatprep.subr.mxu0 0.0
        %1491 = vmatpush1.msra.mxu0 0.0
        %1492 = vmatprep.subr.mxu0 0.0
        %1493 = vmatpush1.msra.mxu0 0.0
        %1494 = vmatprep.subr.mxu0 0.0
        %1495 = vmatpush1.msra.mxu0 0.0
        %1496 = vmatprep.subr.mxu0 0.0
        %1497 = vmatpush1.msra.mxu0 0.0
        %1498 = vmatprep.subr.mxu0 0.0
        %1499 = vmatpush1.msra.mxu0 0.0
        %1500 = vmatprep.subr.mxu0 0.0
        %1501 = vmatpush1.msra.mxu0 0.0
        %1502 = vmatprep.subr.mxu0 0.0
        %1503 = vmatpush1.msra.mxu0 0.0
        %1504 = vmatprep.subr.mxu0 0.0
        %1505 = vmatpush1.msra.mxu0 0.0
        %1506 = vmatprep.subr.mxu0 0.0
        %1507 = vmatpush1.msra.mxu0 0.0
        %1508 = vmatprep.subr.mxu0 0.0
        %1509 = vmatpush1.msra.mxu0 0.0
        %1510 = vmatprep.subr.mxu0 0.0
        %1511 = vmatpush1.msra.mxu0 0.0
        %1512 = vmatprep.subr.mxu0 0.0
        %1513 = vmatpush1.msra.mxu0 0.0
        %1514 = vmatprep.mubr.f32.mxu0 0.0
        %1515 = vmatmul.mubr.f32.gmra.mrb[0].mxu0 %v1371
        %v1516 = vpop.f32.mrb[0].mxu0
        %v1517 = vadd.f32 0.0, %v1516
        %v1518 = vpop.f32.mrb[0].mxu0
        %1519 = vdwg.mxu0
        %v1520 = vadd.f32 %v1356, %v1446
        %v1521 = vadd.f32 %v1357, %v1448
        %v1522 = vadd.f32 %v1358, %v1517
        %s1523 = scalar_lea.vmem [#allocation5], 32
        %v1524 = vld [vmem:[%s1523] sm:$0xf]
        %1525 = vrot.lane.b32.xlu0 %v202, 109
        %v1526 = vpop.permute.xlu0 %1525
        %1527 = vrot.lane.b32.xlu0 %v206, 109
        %v1528 = vpop.permute.xlu0 %1527
        %1529 = vrot.lane.b32.xlu0 %v211, 109
        %v1530 = vpop.permute.xlu0 %1529
        %vm1531 = vcmask 891904
        %v1532 = vsel %vm1531, %v1526, %v1528
        %v1533 = vsel %vm1531, %v1528, %v1530
        %v1535 = vsel %vm233, %v1524, 0
        %v1537 = vsel %vm237, %v1532, 0
        %v1539 = vsel %vm237, %v1533, 0
        %v1541 = vsel %vm237, %v1530, 0
        %1543 = vmatprep.subr.mxu0 %v1539
        %1544 = vmatpush1.msra.mxu0 %v1537
        %1545 = vmatprep.subr.mxu0 0.0
        %1546 = vmatpush1.msra.mxu0 0.0
        %1547 = vmatprep.subr.mxu0 0.0
        %1548 = vmatpush1.msra.mxu0 0.0
        %1549 = vmatprep.subr.mxu0 0.0
        %1550 = vmatpush1.msra.mxu0 0.0
        %1551 = vmatprep.subr.mxu0 0.0
        %1552 = vmatpush1.msra.mxu0 0.0
        %1553 = vmatprep.subr.mxu0 0.0
        %1554 = vmatpush1.msra.mxu0 0.0
        %1555 = vmatprep.subr.mxu0 0.0
        %1556 = vmatpush1.msra.mxu0 0.0
        %1557 = vmatprep.subr.mxu0 0.0
        %1558 = vmatpush1.msra.mxu0 0.0
        %1559 = vmatprep.subr.mxu0 0.0
        %1560 = vmatpush1.msra.mxu0 0.0
        %1561 = vmatprep.subr.mxu0 0.0
        %1562 = vmatpush1.msra.mxu0 0.0
        %1563 = vmatprep.subr.mxu0 0.0
        %1564 = vmatpush1.msra.mxu0 0.0
        %1565 = vmatprep.subr.mxu0 0.0
        %1566 = vmatpush1.msra.mxu0 0.0
        %1567 = vmatprep.subr.mxu0 0.0
        %1568 = vmatpush1.msra.mxu0 0.0
        %1569 = vmatprep.subr.mxu0 0.0
        %1570 = vmatpush1.msra.mxu0 0.0
        %1571 = vmatprep.subr.mxu0 0.0
        %1572 = vmatpush1.msra.mxu0 0.0
        %1573 = vmatprep.subr.mxu0 0.0
        %1574 = vmatpush1.msra.mxu0 0.0
        %1575 = vmatprep.subr.mxu0 0.0
        %1576 = vmatpush1.msra.mxu0 0.0
        %1577 = vmatprep.subr.mxu0 0.0
        %1578 = vmatpush1.msra.mxu0 0.0
        %1579 = vmatprep.subr.mxu0 0.0
        %1580 = vmatpush1.msra.mxu0 0.0
        %1581 = vmatprep.subr.mxu0 0.0
        %1582 = vmatpush1.msra.mxu0 0.0
        %1583 = vmatprep.subr.mxu0 0.0
        %1584 = vmatpush1.msra.mxu0 0.0
        %1585 = vmatprep.subr.mxu0 0.0
        %1586 = vmatpush1.msra.mxu0 0.0
        %1587 = vmatprep.subr.mxu0 0.0
        %1588 = vmatpush1.msra.mxu0 0.0
        %1589 = vmatprep.subr.mxu0 0.0
        %1590 = vmatpush1.msra.mxu0 0.0
        %1591 = vmatprep.subr.mxu0 0.0
        %1592 = vmatpush1.msra.mxu0 0.0
        %1593 = vmatprep.subr.mxu0 0.0
        %1594 = vmatpush1.msra.mxu0 0.0
        %1595 = vmatprep.subr.mxu0 0.0
        %1596 = vmatpush1.msra.mxu0 0.0
        %1597 = vmatprep.subr.mxu0 0.0
        %1598 = vmatpush1.msra.mxu0 0.0
        %1599 = vmatprep.subr.mxu0 0.0
        %1600 = vmatpush1.msra.mxu0 0.0
        %1601 = vmatprep.subr.mxu0 0.0
        %1602 = vmatpush1.msra.mxu0 0.0
        %1603 = vmatprep.subr.mxu0 0.0
        %1604 = vmatpush1.msra.mxu0 0.0
        %1605 = vmatprep.subr.mxu0 0.0
        %1606 = vmatpush1.msra.mxu0 0.0
        %1607 = vmatprep.mubr.f32.mxu0 0.0
        %1608 = vmatmul.mubr.f32.gmra.mrb[0].mxu0 %v1535
        %v1609 = vpop.f32.mrb[0].mxu0
        %v1610 = vadd.f32 0.0, %v1609
        %v1611 = vpop.f32.mrb[0].mxu0
        %v1612 = vadd.f32 0.0, %v1611
        %1613 = vdwg.mxu0
        %1614 = vmatprep.subr.mxu0 0.0
        %1615 = vmatpush1.msra.mxu0 %v1541
        %1616 = vmatprep.subr.mxu0 0.0
        %1617 = vmatpush1.msra.mxu0 0.0
        %1618 = vmatprep.subr.mxu0 0.0
        %1619 = vmatpush1.msra.mxu0 0.0
        %1620 = vmatprep.subr.mxu0 0.0
        %1621 = vmatpush1.msra.mxu0 0.0
        %1622 = vmatprep.subr.mxu0 0.0
        %1623 = vmatpush1.msra.mxu0 0.0
        %1624 = vmatprep.subr.mxu0 0.0
        %1625 = vmatpush1.msra.mxu0 0.0
        %1626 = vmatprep.subr.mxu0 0.0
        %1627 = vmatpush1.msra.mxu0 0.0
        %1628 = vmatprep.subr.mxu0 0.0
        %1629 = vmatpush1.msra.mxu0 0.0
        %1630 = vmatprep.subr.mxu0 0.0
        %1631 = vmatpush1.msra.mxu0 0.0
        %1632 = vmatprep.subr.mxu0 0.0
        %1633 = vmatpush1.msra.mxu0 0.0
        %1634 = vmatprep.subr.mxu0 0.0
        %1635 = vmatpush1.msra.mxu0 0.0
        %1636 = vmatprep.subr.mxu0 0.0
        %1637 = vmatpush1.msra.mxu0 0.0
        %1638 = vmatprep.subr.mxu0 0.0
        %1639 = vmatpush1.msra.mxu0 0.0
        %1640 = vmatprep.subr.mxu0 0.0
        %1641 = vmatpush1.msra.mxu0 0.0
        %1642 = vmatprep.subr.mxu0 0.0
        %1643 = vmatpush1.msra.mxu0 0.0
        %1644 = vmatprep.subr.mxu0 0.0
        %1645 = vmatpush1.msra.mxu0 0.0
        %1646 = vmatprep.subr.mxu0 0.0
        %1647 = vmatpush1.msra.mxu0 0.0
        %1648 = vmatprep.subr.mxu0 0.0
        %1649 = vmatpush1.msra.mxu0 0.0
        %1650 = vmatprep.subr.mxu0 0.0
        %1651 = vmatpush1.msra.mxu0 0.0
        %1652 = vmatprep.subr.mxu0 0.0
        %1653 = vmatpush1.msra.mxu0 0.0
        %1654 = vmatprep.subr.mxu0 0.0
        %1655 = vmatpush1.msra.mxu0 0.0
        %1656 = vmatprep.subr.mxu0 0.0
        %1657 = vmatpush1.msra.mxu0 0.0
        %1658 = vmatprep.subr.mxu0 0.0
        %1659 = vmatpush1.msra.mxu0 0.0
        %1660 = vmatprep.subr.mxu0 0.0
        %1661 = vmatpush1.msra.mxu0 0.0
        %1662 = vmatprep.subr.mxu0 0.0
        %1663 = vmatpush1.msra.mxu0 0.0
        %1664 = vmatprep.subr.mxu0 0.0
        %1665 = vmatpush1.msra.mxu0 0.0
        %1666 = vmatprep.subr.mxu0 0.0
        %1667 = vmatpush1.msra.mxu0 0.0
        %1668 = vmatprep.subr.mxu0 0.0
        %1669 = vmatpush1.msra.mxu0 0.0
        %1670 = vmatprep.subr.mxu0 0.0
        %1671 = vmatpush1.msra.mxu0 0.0
        %1672 = vmatprep.subr.mxu0 0.0
        %1673 = vmatpush1.msra.mxu0 0.0
        %1674 = vmatprep.subr.mxu0 0.0
        %1675 = vmatpush1.msra.mxu0 0.0
        %1676 = vmatprep.subr.mxu0 0.0
        %1677 = vmatpush1.msra.mxu0 0.0
        %1678 = vmatprep.mubr.f32.mxu0 0.0
        %1679 = vmatmul.mubr.f32.gmra.mrb[0].mxu0 %v1535
        %v1680 = vpop.f32.mrb[0].mxu0
        %v1681 = vadd.f32 0.0, %v1680
        %v1682 = vpop.f32.mrb[0].mxu0
        %1683 = vdwg.mxu0
        %v1684 = vadd.f32 %v1520, %v1610
        %v1685 = vadd.f32 %v1521, %v1612
        %v1686 = vadd.f32 %v1522, %v1681
        %v1687 = vld [vmem:[%s2] sm:$0x7]
        %v1689 = vlaneseq
        %v1690 = vshrl.u32 %v1689, 7
        %v1691 = vsub.s32 0, %v1690
        %v1692 = vrot.slane %v1687, %v1691
        %v1693 = vlaneseq
        %v1694 = vshrl.u32 %v1693, 7
        %v1695 = vsub.s32 1, %v1694
        %v1696 = vrot.slane %v1687, %v1695
        %v1697 = vlaneseq
        %v1698 = vshrl.u32 %v1697, 7
        %v1699 = vsub.s32 2, %v1698
        %v1700 = vrot.slane %v1687, %v1699
        %v1704 = vmul.f32 %v1684, %v1692
        %v1705 = vmul.f32 %v1685, %v1696
        %v1706 = vmul.f32 %v1686, %v1700
        %v1707 = vsel %vm237, %v1704, 0.0
        %v1708 = vsel %vm237, %v1705, 0.0
        %v1709 = vadd.f32 %v1707, %v1708
        %vm1710 = vcmask 551936
        %v1711 = vsel %vm1710, %v1706, 0.0
        %v1712 = vadd.f32 %v1709, %v1711
        %1713 = vadd.xlane.f32.xlu0 %v1712
        %v1714 = vpop.xlane.xlu0 %1713
        %v1715 = vmul.f32 %v1714, 0.00390625
        %v1716 = vmul.f32 %v1704, %v1684
        %v1717 = vmul.f32 %v1705, %v1685
        %v1718 = vmul.f32 %v1706, %v1686
        %v1719 = vsel %vm237, %v1716, 0.0
        %v1720 = vsel %vm237, %v1717, 0.0
        %v1721 = vadd.f32 %v1719, %v1720
        %v1722 = vsel %vm1710, %v1718, 0.0
        %v1723 = vadd.f32 %v1721, %v1722
        %1724 = vadd.xlane.f32.xlu0 %v1723
        %v1725 = vpop.xlane.xlu0 %1724
        %v1726 = vmul.f32 %v1725, 0.00390625
        %v1727 = vmul.f32 %v1715, %v1715
        %v1728 = vsub.f32 %v1726, %v1727
        %v1729 = vsub.f32 %v1684, %v1715
        %v1730 = vsub.f32 %v1685, %v1715
        %v1731 = vsub.f32 %v1686, %v1715
        %v1732 = vadd.f32 %v1728, 1e-05
        %v1733 = vrsqrt.pop %v1732
        %v1734 = vmul.f32 %v1729, %v1733
        %v1735 = vmul.f32 %v1730, %v1733
        %v1736 = vmul.f32 %v1731, %v1733
        %v1737 = vmax.f32 %v1734, 0.0
        %v1738 = vmax.f32 %v1735, 0.0
        %v1739 = vmax.f32 %v1736, 0.0
        %v1742 = vcombine.low %v1737, %v1738
        %v1744 = vadd.f32 %v202, %v1742
        %v1745 = vadd.f32 %v203, %v1739
        %1746 = vst [vmem:[%s201] sm:$0xff] %v1744
        %1747 = vst.msk [vmem:[%s201 + $0x8] sm:$0xf] %vm1710, %v1745
        %s1748 = sand.u32 %s97, 1
        %s1749 = scalar_lea.sflag [#allocation4], %s1748
        %s1750 = sand.u32 %s97, 1
        %s1751 = smul.addr %s1750, 12
        %s1752 = scalar_lea.vmem [#allocation7], %s1751
        // Predicated region
        $region41: #{tpu_custom_call.1} parent=31 // pred_check
          %p1753 = pneg %p107
        $region42: #{tpu_custom_call.1} parent=31 // pred_check_branch
          %1755 = sbr.rel (%p1753) target = $region44
        $region43: #{tpu_custom_call.1} parent=31 // pred_region
          %s1757 = ssub.s32 192, 192
          %1758 = vsyncadd %s1749, %s1757
          %s1759 = smul.addr %s21, 3
          %s1760 = smul.addr %s1759, 64
          %s1761 = scalar_lea.hbm %s3, %s1760
          %s1763 = sshll.u32 %s1752, 4
          %s1764 = int_to_ptr.vmem [resolvable:$true] %s1763
          %1766 = dma.vmem_to_hbm [thread:$0]  %s1764, 192, %s1761, %s1749
        $region44: #{tpu_custom_call.1} parent=31 // pred_fallthru
          _
      $region32: #{tpu_custom_call.1} parent=5 // pred_fallthru
        _
      %p1767 = scmp.le.s32.totalorder 2, %s16
      // Predicated region
      $region45: #{tpu_custom_call.1} parent=5 // pred_check
        %p1768 = pneg %p1767
      $region46: #{tpu_custom_call.1} parent=5 // pred_check_branch
        %1770 = sbr.rel (%p1768) target = $region48
      $region47: #{tpu_custom_call.1} parent=5 // pred_region
        %s1771 = ssub.s32 %s16, 2
        // Predicated region
        $region49: #{tpu_custom_call.1} parent=47 // pred_check
          %p1772 = pneg %p113
        $region50: #{tpu_custom_call.1} parent=47 // pred_check_branch
          %1774 = sbr.rel (%p1772) target = $region52
        $region51: #{tpu_custom_call.1} parent=47 // pred_region
          %s1775 = sand.u32 %s98, 1
          %s1776 = scalar_lea.sflag [#allocation4], %s1775
          %s1777 = sand.u32 %s98, 1
          %s1778 = smul.addr %s1777, 12
          %s1779 = scalar_lea.vmem [#allocation7], %s1778
          %1780 = dma.done %s1776, 192
        $region52: #{tpu_custom_call.1} parent=47 // pred_fallthru
          _
      $region48: #{tpu_custom_call.1} parent=5 // pred_fallthru
        _
    $region6: #{tpu_custom_call.1} parent=1 // loop_footer
      %s20 = sadd.s32 1, %s16
    $region7: #{tpu_custom_call.1} parent=1 // loop_footer_branch
      %15 = sbr.rel target = $region3
    $region8: #{tpu_custom_call.1} parent=1 // loop_exit
      _
    %1781 = vsyncpa [#allocation3], 1
    %s1782 = scalar_lea.sflag [#allocation3], 1
    %1783 = vsyncpa %s1782, 1
    %1784 = vsyncpa [#allocation6], 1
    %1785 = vsyncpa [#allocation4], 1
    %s1786 = scalar_lea.sflag [#allocation4], 1
    %1787 = vsyncpa %s1786, 1

</llo_original>
